<compile_context>
chip_gen: v7x
topology: tpu7x:2x2x1
jax: 0.10.0
libtpu: 0.0.40
codegen_flags: <defaults>
</compile_context>

<pallas_src>
import functools
import math

import jax
import jax.numpy as jnp
from jax.experimental import pallas as pl
from jax.experimental.pallas import tpu as pltpu

_EPS = 1e-5


def _vmem_limit_bytes():
    # Per-generation scoped-VMEM budget, leaving headroom below physical capacity.
    try:
        cap = int(pltpu.get_tpu_info().vmem_capacity_bytes)
        return max(32 << 20, min(cap - (8 << 20), 100 << 20))
    except Exception:
        return 64 << 20


_VMEM_LIMIT = _vmem_limit_bytes()


def _compiler_params(dims):
    return pltpu.CompilerParams(dimension_semantics=dims,
                                vmem_limit_bytes=_VMEM_LIMIT)


def _pick_lane_tile(hw, bytes_per_lane, budget):
    """Largest lane tile dividing hw that is 128-aligned (or the full extent)
    and keeps the per-grid-step VMEM footprint under `budget`."""
    if hw * bytes_per_lane <= budget:
        return hw
    t = hw - hw % 128
    while t >= 128:
        if hw % t == 0 and t * bytes_per_lane <= budget:
            return t
        t -= 128
    # TODO(synk): no 128-aligned divisor fits the soft budget; fall back to the
    # full extent and rely on the raised vmem_limit_bytes headroom.
    return hw


def _lane_pad(w):
    """Front guard of the padded-row buffer: >=1 lane and chosen so the big
    core-row store lands on a 128-lane boundary."""
    return ((-w) % 128) or 128


def _conv_tiles(cin, cout, h, w):
    """(Cout tile, output-row tile) for the conv, sized against the VMEM budget
    of the current chip generation (v7x: 64 MiB, v5e/v6e: 128 MiB)."""
    budget = max(8 << 20, int(_VMEM_LIMIT * 0.8) - (4 << 20))
    lpad = _lane_pad(w)

    def fits(cout_t, hr):
        n_x = 1 if hr == h else 3                      # cur (+prev/next halo blocks)
        vmem = (n_x * 2 * cin * hr * w * 2             # x blocks, double-buffered
                + 2 * cout_t * 9 * cin * 2             # weight block, double-buffered
                + 2 * cout_t * hr * w * 4              # f32 output block, double-buffered
                + cin * (lpad + (hr + 2) * w + 1) * 2  # padded-row scratch
                + 9 * cin * hr * w * 2                 # staged matmul RHS
                + 2 * cout_t * hr * w * 4              # matmul result temporaries
                + 2 * cin * hr * w * 2)                # staging temporaries
        return vmem <= budget

    cout_cands = [c for c in (cout, 256, 128, 64, 32, 16, 8)
                  if c <= cout and cout % c == 0]
    if cout > 256:  # prefer a <=256 MXU M tile over the full Cout (v6e/v7x MXU depth)
        cout_cands = [c for c in cout_cands if c <= 256] + [cout]
    hr_cands = [d for d in range(h, 0, -1)
                if h % d == 0 and (d == h or (d * w) % 128 == 0)]
    for cout_t in cout_cands:
        for hr in hr_cands:
            if fits(cout_t, hr):
                return cout_t, hr
    # TODO(synk): extremely large Cin*H*W would additionally need a Cin-reduction
    # grid axis; not required at generator sizes.
    return min(cout_cands), hr_cands[-1]


# ----------------------------------------------------------------------------
# Pallas kernels
# ----------------------------------------------------------------------------
def _bn_stats_kernel(x_ref, s1_ref, s2_ref):
    # Per-image partial sum / sum-of-squares, accumulated over the spatial grid
    # axis.  The batch axis is 'parallel' (v7x megacore); the tiny cross-batch
    # reduction happens in the jitted glue.
    @pl.when(pl.program_id(1) == 0)
    def _():
        s1_ref[...] = jnp.zeros_like(s1_ref)
        s2_ref[...] = jnp.zeros_like(s2_ref)

    x = x_ref[0].astype(jnp.float32)                        # (C, Lt)
    s1_ref[0] += jnp.sum(x, axis=1, keepdims=True)
    s2_ref[0] += jnp.sum(x * x, axis=1, keepdims=True)


def _bn_modulate_kernel(x_ref, mean_ref, rstd_ref, m_ref, g_ref, b_ref, o_ref):
    # Fused: normalize + SSCBN modulation + ReLU, emitted as bf16 for the conv.
    #   out = ReLU(nrm + (G*M)*nrm + B*M),  nrm = (x - mean) * rstd
    x = x_ref[0].astype(jnp.float32)                        # (C, Lt)
    nrm = (x - mean_ref[...]) * rstd_ref[...]               # (C,1) broadcast
    msk = m_ref[0].astype(jnp.float32)                      # (1, Lt)
    g = g_ref[0]                                            # (C, 1)
    b = b_ref[0]                                            # (C, 1)
    mod = (g * msk) * nrm + b * msk
    o_ref[0] = jnp.maximum(nrm + mod, 0.0).astype(o_ref.dtype)


def _conv3x3_kernel(*refs, W, Hr, Cin, LPAD, n_rt):
    # im2col-free, single-matmul 3x3 conv over one (batch, Cout tile, row tile):
    #   1) drop the Hr core rows (plus one-row halo from neighbouring blocks)
    #      into a zero-guarded, flattened row buffer in VMEM -> the image border
    #      padding never touches HBM,
    #   2) stage the nine lane-shifted tap windows as one (9*Cin, Hr*W) bf16
    #      matmul RHS (wrapped border columns masked to zero),
    #   3) single MXU matmul with K = 9*Cin, bias add, exact lane-dense store
    #      (no junk columns, no separate f32 accumulator scratch).
    if n_rt > 1:
        x_cur, x_prev, x_next, w_ref, b_ref, o_ref, xrows, stg = refs
    else:
        x_cur, w_ref, b_ref, o_ref, xrows, stg = refs

    # 1) zero the guard / halo regions (aligned stores), then write the core
    #    rows at a 128-lane-aligned offset, then (if tiled) the halo rows.
    xrows[:, 0:LPAD + W] = jnp.zeros((Cin, LPAD + W), jnp.bfloat16)
    tail0 = ((LPAD + (Hr + 1) * W) // 128) * 128
    xrows[:, tail0:] = jnp.zeros((Cin, xrows.shape[1] - tail0), jnp.bfloat16)
    xrows[:, LPAD + W:LPAD + (Hr + 1) * W] = x_cur[0]

    if n_rt > 1:
        r = pl.program_id(2)
        top_ok = (r > 0).astype(jnp.bfloat16)
        xrows[:, LPAD:LPAD + W] = x_prev[0, :, (Hr - 1) * W:Hr * W] * top_ok
        bot_ok = (r < n_rt - 1).astype(jnp.bfloat16)
        xrows[:, LPAD + (Hr + 1) * W:LPAD + (Hr + 2) * W] = x_next[0, :, 0:W] * bot_ok

    # 2) stage the nine shifted tap windows (border columns zeroed in-VMEM).
    col = jax.lax.broadcasted_iota(jnp.int32, (1, Hr * W), 1) % W
    at_left = col == 0
    at_right = col == (W - 1)
    zero = jnp.zeros((), jnp.bfloat16)
    for tap in range(9):
        dy, dx = tap // 3 - 1, tap % 3 - 1
        s = LPAD + (dy + 1) * W + dx                         # static lane offset
        win = xrows[:, s:s + Hr * W]
        if dx == -1:
            win = jnp.where(at_left, zero, win)
        elif dx == 1:
            win = jnp.where(at_right, zero, win)
        stg[tap * Cin:(tap + 1) * Cin, :] = win

    # 3) one K = 9*Cin MXU matmul; f32 accumulate; lane-dense exact output.
    y = jnp.dot(w_ref[...], stg[...], preferred_element_type=jnp.float32)
    o_ref[0] = y + b_ref[...]


# ----------------------------------------------------------------------------
# op wrappers
# ----------------------------------------------------------------------------
def _bn_stats(x_flat):
    # TODO(synk): at the model level these stats could be produced as an
    # epilogue of the layer that produces X, saving one full HBM read of X.
    N, C, HW = x_flat.shape
    Lt = _pick_lane_tile(HW, 8 * C + 16, _VMEM_LIMIT // 2)
    T = HW // Lt
    s1, s2 = pl.pallas_call(
        _bn_stats_kernel,
        out_shape=(jax.ShapeDtypeStruct((N, C, 1), jnp.float32),
                   jax.ShapeDtypeStruct((N, C, 1), jnp.float32)),
        grid=(N, T),
        in_specs=[pl.BlockSpec((1, C, Lt), lambda n, t: (n, 0, t))],
        out_specs=(pl.BlockSpec((1, C, 1), lambda n, t: (n, 0, 0)),
                   pl.BlockSpec((1, C, 1), lambda n, t: (n, 0, 0))),
        compiler_params=_compiler_params(("parallel", "arbitrary")),
    )(x_flat)
    cnt = float(N * HW)
    mean = jnp.sum(s1, axis=0) / cnt                         # (C, 1)
    ex2 = jnp.sum(s2, axis=0) / cnt
    var = ex2 - mean * mean        # f32 sums; fine at these activation scales
    rstd = jax.lax.rsqrt(var + _EPS)
    return mean, rstd


def _bn_modulate(x_flat, mean, rstd, m_flat, g, b):
    N, C, HW = x_flat.shape
    Lt = _pick_lane_tile(HW, 12 * C + 16, _VMEM_LIMIT // 2)
    T = HW // Lt
    return pl.pallas_call(
        _bn_modulate_kernel,
        out_shape=jax.ShapeDtypeStruct((N, C, HW), jnp.bfloat16),
        grid=(N, T),
        in_specs=[pl.BlockSpec((1, C, Lt), lambda n, t: (n, 0, t)),
                  pl.BlockSpec((C, 1), lambda n, t: (0, 0)),
                  pl.BlockSpec((C, 1), lambda n, t: (0, 0)),
                  pl.BlockSpec((1, 1, Lt), lambda n, t: (n, 0, t)),
                  pl.BlockSpec((1, C, 1), lambda n, t: (n, 0, 0)),
                  pl.BlockSpec((1, C, 1), lambda n, t: (n, 0, 0))],
        out_specs=pl.BlockSpec((1, C, Lt), lambda n, t: (n, 0, t)),
        compiler_params=_compiler_params(("parallel", "parallel")),
    )(x_flat, mean, rstd, m_flat, g[:, :, None], b[:, :, None])


def _conv3x3(act_flat, w_cat, bias, H, W):
    # act_flat: (N, Cin, H*W) bf16,  w_cat: (Cout, 9*Cin) bf16,  bias: (Cout,) f32
    N, Cin, HW = act_flat.shape
    Cout = w_cat.shape[0]
    cout_t, hr = _conv_tiles(Cin, Cout, H, W)
    n_co, n_rt = Cout // cout_t, H // hr
    lpad = _lane_pad(W)
    lrows = lpad + (hr + 2) * W + 1

    in_specs = [pl.BlockSpec((1, Cin, hr * W), lambda n, c, r: (n, 0, r))]
    operands = [act_flat]
    if n_rt > 1:
        # Neighbouring row blocks supply the one-row halo (clamped indices keep
        # everything in-bounds; the kernel masks the image border to zero).
        in_specs += [pl.BlockSpec((1, Cin, hr * W),
                                  lambda n, c, r: (n, 0, jnp.maximum(r - 1, 0))),
                     pl.BlockSpec((1, Cin, hr * W),
                                  lambda n, c, r: (n, 0, jnp.minimum(r + 1, n_rt - 1)))]
        operands += [act_flat, act_flat]
    in_specs += [pl.BlockSpec((cout_t, 9 * Cin), lambda n, c, r: (c, 0)),
                 pl.BlockSpec((cout_t, 1), lambda n, c, r: (c, 0))]
    operands += [w_cat, bias.reshape(Cout, 1)]

    kern = functools.partial(_conv3x3_kernel, W=W, Hr=hr, Cin=Cin,
                             LPAD=lpad, n_rt=n_rt)
    return pl.pallas_call(
        kern,
        out_shape=jax.ShapeDtypeStruct((N, Cout, HW), jnp.float32),
        grid=(N, n_co, n_rt),
        in_specs=in_specs,
        out_specs=pl.BlockSpec((1, cout_t, hr * W), lambda n, c, r: (n, c, r)),
        scratch_shapes=[pltpu.VMEM((Cin, lrows), jnp.bfloat16),
                        pltpu.VMEM((9 * Cin, hr * W), jnp.bfloat16)],
        compiler_params=_compiler_params(("parallel", "parallel", "parallel")),
    )(*operands)


# ----------------------------------------------------------------------------
# parameters
# ----------------------------------------------------------------------------
def init_sscbn_params(key, icn, ocn, tdf, hdf):
    ks = jax.random.split(key, 10)

    def lin(k1, k2, din, dout):
        s = 1.0 / math.sqrt(din)
        return (jax.random.uniform(k1, (din, dout), jnp.float32, -s, s),
                jax.random.uniform(k2, (dout,), jnp.float32, -s, s))

    w0g, b0g = lin(ks[0], ks[1], tdf, hdf)
    w1g, b1g = lin(ks[2], ks[3], hdf, icn)
    w0b, b0b = lin(ks[4], ks[5], tdf, hdf)
    w1b, b1b = lin(ks[6], ks[7], hdf, icn)
    s = 1.0 / math.sqrt(icn * 9)
    cw = jax.random.uniform(ks[8], (ocn, icn, 3, 3), jnp.float32, -s, s)
    cb = jax.random.uniform(ks[9], (ocn,), jnp.float32, -s, s)
    return dict(w0g=w0g, b0g=b0g, w1g=w1g, b1g=b1g,
                w0b=w0b, b0b=b0b, w1b=w1b, b1b=b1b, cw=cw, cb=cb)


def prepare_params(raw):
    """One-time repack: conv weights -> (Cout, 9*Cin) bf16 in (ky, kx, cin) order,
    matching the staged matmul RHS row order used by the conv kernel."""
    ocn, icn = raw["cw"].shape[:2]
    w_cat = jnp.transpose(raw["cw"], (0, 2, 3, 1)).reshape(ocn, 9 * icn)
    p = dict(raw)
    p["w_cat"] = w_cat.astype(jnp.bfloat16)
    return p


# ----------------------------------------------------------------------------
# forward
# ----------------------------------------------------------------------------
@jax.jit
def sscbn_forward(params, X, M, T):
    N, C, H, W = X.shape
    HW = H * W

    x_flat = X.reshape(N, C, HW)
    mean, rstd = _bn_stats(x_flat)                                   # (C,1) each

    # Conditioning MLPs: far below one MXU tile -> plain jnp (fused by XLA).
    g = jnp.maximum(T @ params["w0g"] + params["b0g"], 0.0) @ params["w1g"] + params["b1g"]
    b = jnp.maximum(T @ params["w0b"] + params["b0b"], 0.0) @ params["w1b"] + params["b1b"]

    m_flat = M.reshape(N, 1, HW)
    act = _bn_modulate(x_flat, mean, rstd, m_flat, g, b)             # bf16 (N,C,HW)

    out = _conv3x3(act, params["w_cat"], params["cb"], H, W)         # f32 (N,Cout,HW)
    return out.reshape(N, -1, H, W)


# ----------------------------------------------------------------------------
# plain-JAX reference (mirrors kernel numerics: bf16 conv operands, f32 acc)
# ----------------------------------------------------------------------------
def sscbn_reference(raw, X, M, T):
    mean = jnp.mean(X, axis=(0, 2, 3), keepdims=True)
    var = jnp.mean(jnp.square(X), axis=(0, 2, 3), keepdims=True) - jnp.square(mean)
    nrm = (X - mean) * jax.lax.rsqrt(var + _EPS)
    g = jnp.maximum(T @ raw["w0g"] + raw["b0g"], 0.0) @ raw["w1g"] + raw["b1g"]
    b = jnp.maximum(T @ raw["w0b"] + raw["b0b"], 0.0) @ raw["w1b"] + raw["b1b"]
    G = g[:, :, None, None]
    B = b[:, :, None, None]
    act = jnp.maximum(nrm + (G * M) * nrm + B * M, 0.0)
    y = jax.lax.conv_general_dilated(
        act.astype(jnp.bfloat16), raw["cw"].astype(jnp.bfloat16),
        window_strides=(1, 1), padding=((1, 1), (1, 1)),
        dimension_numbers=("NCHW", "OIHW", "NCHW"),
        preferred_element_type=jnp.float32)
    return y + raw["cb"][None, :, None, None]


# ----------------------------------------------------------------------------
if __name__ == "__main__":
    batch, icn, ocn, tdf, hdf, H, W = 2, 32, 32, 16, 32, 16, 16

    key = jax.random.PRNGKey(0)
    kp, kx, km, kt = jax.random.split(key, 4)
    raw = init_sscbn_params(kp, icn, ocn, tdf, hdf)
    params = prepare_params(raw)

    X = jax.random.normal(kx, (batch, icn, H, W), jnp.float32)
    M = jax.random.uniform(km, (batch, 1, H, W), jnp.float32)        # mask in [0,1]
    T = jax.random.normal(kt, (batch, tdf), jnp.float32)

    out = jax.block_until_ready(sscbn_forward(params, X, M, T))

    assert out.shape == (batch, ocn, H, W), out.shape
    assert bool(jnp.all(jnp.isfinite(out)))

    ref = sscbn_reference(raw, X, M, T)
    err = float(jnp.max(jnp.abs(out - ref)))
    assert err < 1e-2, f"max abs error {err}"
    print("KERNEL_OK")
</pallas_src>

<mosaic_0001>
module attributes {stable_mosaic.version = 11 : i64} {
  func.func @_bn_stats_kernel(%arg0: i32, %arg1: i32, %arg2: memref<1x32x256xf32, #tpu.memory_space<vmem>>, %arg3: memref<1x32x1xf32, #tpu.memory_space<vmem>>, %arg4: memref<1x32x1xf32, #tpu.memory_space<vmem>>) attributes {dimension_semantics = [#tpu.dimension_semantics<parallel>, #tpu.dimension_semantics<arbitrary>], iteration_bounds = array<i64: 2, 1>, scalar_prefetch = 0 : i64, scratch_operands = 0 : i64, tpu.core_type = #tpu.core_type<tc>, window_params = [{transform_indices = @transform_0, window_bounds = array<i64: 1, 32, 256>}, {transform_indices = @transform_1, window_bounds = array<i64: 1, 32, 1>}, {transform_indices = @transform_2, window_bounds = array<i64: 1, 32, 1>}]} {
    %c0_i32 = arith.constant 0 : i32
    %0 = arith.cmpi eq, %arg1, %c0_i32 : i32
    %1 = arith.extui %0 : i1 to i32
    %c0_i32_0 = arith.constant 0 : i32
    %2 = arith.cmpi ne, %1, %c0_i32_0 : i32
    scf.if %2 {
      %cst_16 = arith.constant 0.000000e+00 : f32
      %22 = vector.broadcast %cst_16 : f32 to vector<1x32x1xf32>
      %c0_17 = arith.constant 0 : index
      %c0_18 = arith.constant 0 : index
      %c0_19 = arith.constant 0 : index
      %23 = vector.load %arg3[%c0_17, %c0_18, %c0_19] : memref<1x32x1xf32, #tpu.memory_space<vmem>>, vector<1x32x1xf32>
      tpu.vector_store %arg3[%c0_17, %c0_18, %c0_19], %22 {strides = array<i32>} : memref<1x32x1xf32, #tpu.memory_space<vmem>>, vector<1x32x1xf32>,
      %cst_20 = arith.constant 0.000000e+00 : f32
      %24 = vector.broadcast %cst_20 : f32 to vector<1x32x1xf32>
      %c0_21 = arith.constant 0 : index
      %c0_22 = arith.constant 0 : index
      %c0_23 = arith.constant 0 : index
      %25 = vector.load %arg4[%c0_21, %c0_22, %c0_23] : memref<1x32x1xf32, #tpu.memory_space<vmem>>, vector<1x32x1xf32>
      tpu.vector_store %arg4[%c0_21, %c0_22, %c0_23], %24 {strides = array<i32>} : memref<1x32x1xf32, #tpu.memory_space<vmem>>, vector<1x32x1xf32>,
    } else {
    }
    %c0 = arith.constant 0 : index
    %c0_1 = arith.constant 0 : index
    %c0_2 = arith.constant 0 : index
    %3 = vector.load %arg2[%c0, %c0_1, %c0_2] : memref<1x32x256xf32, #tpu.memory_space<vmem>>, vector<1x32x256xf32>
    %4 = vector.shape_cast %3 : vector<1x32x256xf32> to vector<32x256xf32>
    %c0_3 = arith.constant 0 : index
    %c0_4 = arith.constant 0 : index
    %c0_5 = arith.constant 0 : index
    %5 = vector.load %arg3[%c0_3, %c0_4, %c0_5] : memref<1x32x1xf32, #tpu.memory_space<vmem>>, vector<1x32x1xf32>
    %6 = vector.shape_cast %5 : vector<1x32x1xf32> to vector<32x1xf32>
    %cst = arith.constant dense<0.000000e+00> : vector<32xf32>
    %7 = vector.multi_reduction <add>, %4, %cst [1] : vector<32x256xf32> to vector<32xf32>
    %8 = vector.shape_cast %7 : vector<32xf32> to vector<32x1xf32>
    %9 = arith.addf %6, %8 : vector<32x1xf32>
    %c0_6 = arith.constant 0 : index
    %c0_7 = arith.constant 0 : index
    %c0_8 = arith.constant 0 : index
    %10 = vector.load %arg3[%c0_6, %c0_7, %c0_8] : memref<1x32x1xf32, #tpu.memory_space<vmem>>, vector<1x32x1xf32>
    %11 = vector.shape_cast %10 : vector<1x32x1xf32> to vector<32x1xf32>
    %12 = vector.shape_cast %9 : vector<32x1xf32> to vector<1x32x1xf32>
    tpu.vector_store %arg3[%c0_6, %c0_7, %c0_8], %12 {strides = array<i32>} : memref<1x32x1xf32, #tpu.memory_space<vmem>>, vector<1x32x1xf32>,
    %c0_9 = arith.constant 0 : index
    %c0_10 = arith.constant 0 : index
    %c0_11 = arith.constant 0 : index
    %13 = vector.load %arg4[%c0_9, %c0_10, %c0_11] : memref<1x32x1xf32, #tpu.memory_space<vmem>>, vector<1x32x1xf32>
    %14 = vector.shape_cast %13 : vector<1x32x1xf32> to vector<32x1xf32>
    %15 = arith.mulf %4, %4 : vector<32x256xf32>
    %cst_12 = arith.constant dense<0.000000e+00> : vector<32xf32>
    %16 = vector.multi_reduction <add>, %15, %cst_12 [1] : vector<32x256xf32> to vector<32xf32>
    %17 = vector.shape_cast %16 : vector<32xf32> to vector<32x1xf32>
    %18 = arith.addf %14, %17 : vector<32x1xf32>
    %c0_13 = arith.constant 0 : index
    %c0_14 = arith.constant 0 : index
    %c0_15 = arith.constant 0 : index
    %19 = vector.load %arg4[%c0_13, %c0_14, %c0_15] : memref<1x32x1xf32, #tpu.memory_space<vmem>>, vector<1x32x1xf32>
    %20 = vector.shape_cast %19 : vector<1x32x1xf32> to vector<32x1xf32>
    %21 = vector.shape_cast %18 : vector<32x1xf32> to vector<1x32x1xf32>
    tpu.vector_store %arg4[%c0_13, %c0_14, %c0_15], %21 {strides = array<i32>} : memref<1x32x1xf32, #tpu.memory_space<vmem>>, vector<1x32x1xf32>,
    return
  }
  func.func @transform_0(%arg0: i32, %arg1: i32) -> (i32, i32, i32) {
    %c0_i32 = arith.constant 0 : i32
    %c0_i32_0 = arith.constant 0 : i32
    return %arg0, %c0_i32, %arg1 : i32, i32, i32
  }
  func.func @transform_1(%arg0: i32, %arg1: i32) -> (i32, i32, i32) {
    %c0_i32 = arith.constant 0 : i32
    %c0_i32_0 = arith.constant 0 : i32
    %c0_i32_1 = arith.constant 0 : i32
    return %arg0, %c0_i32, %c0_i32_0 : i32, i32, i32
  }
  func.func @transform_2(%arg0: i32, %arg1: i32) -> (i32, i32, i32) {
    %c0_i32 = arith.constant 0 : i32
    %c0_i32_0 = arith.constant 0 : i32
    %c0_i32_1 = arith.constant 0 : i32
    return %arg0, %c0_i32, %c0_i32_0 : i32, i32, i32
  }
}

module attributes {stable_mosaic.version = 11 : i64} {
  func.func @_bn_modulate_kernel(%arg0: i32, %arg1: i32, %arg2: memref<1x32x256xf32, #tpu.memory_space<vmem>>, %arg3: memref<32x1xf32, #tpu.memory_space<vmem>>, %arg4: memref<32x1xf32, #tpu.memory_space<vmem>>, %arg5: memref<1x1x256xf32, #tpu.memory_space<vmem>>, %arg6: memref<1x32x1xf32, #tpu.memory_space<vmem>>, %arg7: memref<1x32x1xf32, #tpu.memory_space<vmem>>, %arg8: memref<1x32x256xbf16, #tpu.memory_space<vmem>>) attributes {dimension_semantics = [#tpu.dimension_semantics<parallel>, #tpu.dimension_semantics<parallel>], iteration_bounds = array<i64: 2, 1>, scalar_prefetch = 0 : i64, scratch_operands = 0 : i64, tpu.core_type = #tpu.core_type<tc>, window_params = [{transform_indices = @transform_0, window_bounds = array<i64: 1, 32, 256>}, {pipeline_mode = #tpu.pipeline_mode<synchronous>, transform_indices = @transform_1, window_bounds = array<i64: 32, 1>}, {pipeline_mode = #tpu.pipeline_mode<synchronous>, transform_indices = @transform_2, window_bounds = array<i64: 32, 1>}, {transform_indices = @transform_3, window_bounds = array<i64: 1, 1, 256>}, {transform_indices = @transform_4, window_bounds = array<i64: 1, 32, 1>}, {transform_indices = @transform_5, window_bounds = array<i64: 1, 32, 1>}, {transform_indices = @transform_6, window_bounds = array<i64: 1, 32, 256>}]} {
    %c0 = arith.constant 0 : index
    %c0_0 = arith.constant 0 : index
    %c0_1 = arith.constant 0 : index
    %0 = vector.load %arg2[%c0, %c0_0, %c0_1] : memref<1x32x256xf32, #tpu.memory_space<vmem>>, vector<1x32x256xf32>
    %1 = vector.shape_cast %0 : vector<1x32x256xf32> to vector<32x256xf32>
    %c0_2 = arith.constant 0 : index
    %c0_3 = arith.constant 0 : index
    %2 = vector.load %arg3[%c0_2, %c0_3] : memref<32x1xf32, #tpu.memory_space<vmem>>, vector<32x1xf32>
    %3 = vector.broadcast %2 : vector<32x1xf32> to vector<32x256xf32>
    %4 = arith.subf %1, %3 : vector<32x256xf32>
    %c0_4 = arith.constant 0 : index
    %c0_5 = arith.constant 0 : index
    %5 = vector.load %arg4[%c0_4, %c0_5] : memref<32x1xf32, #tpu.memory_space<vmem>>, vector<32x1xf32>
    %6 = vector.broadcast %5 : vector<32x1xf32> to vector<32x256xf32>
    %7 = arith.mulf %4, %6 : vector<32x256xf32>
    %c0_6 = arith.constant 0 : index
    %c0_7 = arith.constant 0 : index
    %c0_8 = arith.constant 0 : index
    %8 = vector.load %arg5[%c0_6, %c0_7, %c0_8] : memref<1x1x256xf32, #tpu.memory_space<vmem>>, vector<1x1x256xf32>
    %9 = vector.shape_cast %8 : vector<1x1x256xf32> to vector<1x256xf32>
    %c0_9 = arith.constant 0 : index
    %c0_10 = arith.constant 0 : index
    %c0_11 = arith.constant 0 : index
    %10 = vector.load %arg6[%c0_9, %c0_10, %c0_11] : memref<1x32x1xf32, #tpu.memory_space<vmem>>, vector<1x32x1xf32>
    %11 = vector.shape_cast %10 : vector<1x32x1xf32> to vector<32x1xf32>
    %c0_12 = arith.constant 0 : index
    %c0_13 = arith.constant 0 : index
    %c0_14 = arith.constant 0 : index
    %12 = vector.load %arg7[%c0_12, %c0_13, %c0_14] : memref<1x32x1xf32, #tpu.memory_space<vmem>>, vector<1x32x1xf32>
    %13 = vector.shape_cast %12 : vector<1x32x1xf32> to vector<32x1xf32>
    %14 = vector.broadcast %11 : vector<32x1xf32> to vector<32x256xf32>
    %15 = vector.broadcast %9 : vector<1x256xf32> to vector<32x256xf32>
    %16 = arith.mulf %14, %15 : vector<32x256xf32>
    %17 = arith.mulf %16, %7 : vector<32x256xf32>
    %18 = vector.broadcast %13 : vector<32x1xf32> to vector<32x256xf32>
    %19 = vector.broadcast %9 : vector<1x256xf32> to vector<32x256xf32>
    %20 = arith.mulf %18, %19 : vector<32x256xf32>
    %21 = arith.addf %17, %20 : vector<32x256xf32>
    %22 = arith.addf %7, %21 : vector<32x256xf32>
    %cst = arith.constant 0.000000e+00 : f32
    %23 = vector.broadcast %cst : f32 to vector<32x256xf32>
    %24 = arith.maximumf %22, %23 : vector<32x256xf32>
    %25 = arith.truncf %24 : vector<32x256xf32> to vector<32x256xbf16>
    %c0_15 = arith.constant 0 : index
    %c0_16 = arith.constant 0 : index
    %c0_17 = arith.constant 0 : index
    %26 = vector.load %arg8[%c0_15, %c0_16, %c0_17] : memref<1x32x256xbf16, #tpu.memory_space<vmem>>, vector<1x32x256xbf16>
    %27 = vector.shape_cast %26 : vector<1x32x256xbf16> to vector<32x256xbf16>
    %28 = vector.shape_cast %25 : vector<32x256xbf16> to vector<1x32x256xbf16>
    tpu.vector_store %arg8[%c0_15, %c0_16, %c0_17], %28 {strides = array<i32>} : memref<1x32x256xbf16, #tpu.memory_space<vmem>>, vector<1x32x256xbf16>,
    return
  }
  func.func @transform_0(%arg0: i32, %arg1: i32) -> (i32, i32, i32) {
    %c0_i32 = arith.constant 0 : i32
    %c0_i32_0 = arith.constant 0 : i32
    return %arg0, %c0_i32, %arg1 : i32, i32, i32
  }
  func.func @transform_1(%arg0: i32, %arg1: i32) -> (i32, i32) {
    %c0_i32 = arith.constant 0 : i32
    %c0_i32_0 = arith.constant 0 : i32
    %c0_i32_1 = arith.constant 0 : i32
    return %c0_i32, %c0_i32_0 : i32, i32
  }
  func.func @transform_2(%arg0: i32, %arg1: i32) -> (i32, i32) {
    %c0_i32 = arith.constant 0 : i32
    %c0_i32_0 = arith.constant 0 : i32
    %c0_i32_1 = arith.constant 0 : i32
    return %c0_i32, %c0_i32_0 : i32, i32
  }
  func.func @transform_3(%arg0: i32, %arg1: i32) -> (i32, i32, i32) {
    %c0_i32 = arith.constant 0 : i32
    %c0_i32_0 = arith.constant 0 : i32
    return %arg0, %c0_i32, %arg1 : i32, i32, i32
  }
  func.func @transform_4(%arg0: i32, %arg1: i32) -> (i32, i32, i32) {
    %c0_i32 = arith.constant 0 : i32
    %c0_i32_0 = arith.constant 0 : i32
    %c0_i32_1 = arith.constant 0 : i32
    return %arg0, %c0_i32, %c0_i32_0 : i32, i32, i32
  }
  func.func @transform_5(%arg0: i32, %arg1: i32) -> (i32, i32, i32) {
    %c0_i32 = arith.constant 0 : i32
    %c0_i32_0 = arith.constant 0 : i32
    %c0_i32_1 = arith.constant 0 : i32
    return %arg0, %c0_i32, %c0_i32_0 : i32, i32, i32
  }
  func.func @transform_6(%arg0: i32, %arg1: i32) -> (i32, i32, i32) {
    %c0_i32 = arith.constant 0 : i32
    %c0_i32_0 = arith.constant 0 : i32
    return %arg0, %c0_i32, %arg1 : i32, i32, i32
  }
}

module attributes {stable_mosaic.version = 11 : i64} {
  func.func @_conv3x3_kernel(%arg0: i32, %arg1: i32, %arg2: i32, %arg3: memref<1x32x256xbf16, #tpu.memory_space<vmem>>, %arg4: memref<32x288xbf16, #tpu.memory_space<vmem>>, %arg5: memref<32x1xf32, #tpu.memory_space<vmem>>, %arg6: memref<1x32x256xf32, #tpu.memory_space<vmem>>, %arg7: memref<32x401xbf16, #tpu.memory_space<vmem>>, %arg8: memref<288x256xbf16, #tpu.memory_space<vmem>>) attributes {dimension_semantics = [#tpu.dimension_semantics<parallel>, #tpu.dimension_semantics<parallel>, #tpu.dimension_semantics<parallel>], iteration_bounds = array<i64: 2, 1, 1>, scalar_prefetch = 0 : i64, scratch_operands = 2 : i64, tpu.core_type = #tpu.core_type<tc>, window_params = [{transform_indices = @transform_0, window_bounds = array<i64: 1, 32, 256>}, {transform_indices = @transform_1, window_bounds = array<i64: 32, 288>}, {transform_indices = @transform_2, window_bounds = array<i64: 32, 1>}, {transform_indices = @transform_3, window_bounds = array<i64: 1, 32, 256>}]} {
    %cst = arith.constant 0.000000e+00 : bf16
    %0 = vector.broadcast %cst : bf16 to vector<32x128xbf16>
    %c0 = arith.constant 0 : index
    %c0_0 = arith.constant 0 : index
    %1 = vector.load %arg7[%c0, %c0_0] : memref<32x401xbf16, #tpu.memory_space<vmem>>, vector<32x128xbf16>
    tpu.vector_store %arg7[%c0, %c0_0], %0 {strides = array<i32>} : memref<32x401xbf16, #tpu.memory_space<vmem>>, vector<32x128xbf16>,
    %cst_1 = arith.constant 0.000000e+00 : bf16
    %2 = vector.broadcast %cst_1 : bf16 to vector<32x17xbf16>
    %c0_2 = arith.constant 0 : index
    %c384 = arith.constant 384 : index
    %3 = vector.load %arg7[%c0_2, %c384] : memref<32x401xbf16, #tpu.memory_space<vmem>>, vector<32x17xbf16>
    tpu.vector_store %arg7[%c0_2, %c384], %2 {strides = array<i32>} : memref<32x401xbf16, #tpu.memory_space<vmem>>, vector<32x17xbf16>,
    %c0_3 = arith.constant 0 : index
    %c0_4 = arith.constant 0 : index
    %c0_5 = arith.constant 0 : index
    %4 = vector.load %arg3[%c0_3, %c0_4, %c0_5] : memref<1x32x256xbf16, #tpu.memory_space<vmem>>, vector<1x32x256xbf16>
    %5 = vector.shape_cast %4 : vector<1x32x256xbf16> to vector<32x256xbf16>
    %c0_6 = arith.constant 0 : index
    %c128 = arith.constant 128 : index
    %6 = vector.load %arg7[%c0_6, %c128] : memref<32x401xbf16, #tpu.memory_space<vmem>>, vector<32x256xbf16>
    tpu.vector_store %arg7[%c0_6, %c128], %5 {strides = array<i32>} : memref<32x401xbf16, #tpu.memory_space<vmem>>, vector<32x256xbf16>,
    %7 = tpu.iota {dimensions = array<i32: 1>} : vector<1x256xi32>
    %c16_i32 = arith.constant 16 : i32
    %c0_i32 = arith.constant 0 : i32
    %8 = arith.cmpi eq, %c16_i32, %c0_i32 : i32
    %c1_i32 = arith.constant 1 : i32
    %9 = arith.select %8, %c1_i32, %c16_i32 : i32
    %10 = vector.broadcast %9 : i32 to vector<1x256xi32>
    %11 = arith.remsi %7, %10 : vector<1x256xi32>
    %c0_i32_7 = arith.constant 0 : i32
    %12 = vector.broadcast %c0_i32_7 : i32 to vector<1x256xi32>
    %13 = arith.cmpi ne, %11, %12 : vector<1x256xi32>
    %c0_i32_8 = arith.constant 0 : i32
    %14 = vector.broadcast %c0_i32_8 : i32 to vector<1x256xi32>
    %15 = arith.cmpi slt, %11, %14 : vector<1x256xi32>
    %c0_i32_9 = arith.constant 0 : i32
    %16 = arith.cmpi slt, %9, %c0_i32_9 : i32
    %17 = vector.broadcast %16 : i1 to vector<1x256xi1>
    %18 = vector.broadcast %17 : vector<1x256xi1> to vector<1x256xi1>
    %19 = arith.xori %15, %18 : vector<1x256xi1>
    %20 = arith.andi %19, %13 : vector<1x256xi1>
    %21 = vector.broadcast %9 : i32 to vector<1x256xi32>
    %22 = arith.addi %11, %21 : vector<1x256xi32>
    %23 = arith.select %20, %22, %11 : vector<1x256xi1>, vector<1x256xi32>
    %c0_i32_10 = arith.constant 0 : i32
    %24 = vector.broadcast %c0_i32_10 : i32 to vector<1x256xi32>
    %25 = arith.cmpi eq, %23, %24 : vector<1x256xi32>
    %c15_i32 = arith.constant 15 : i32
    %26 = vector.broadcast %c15_i32 : i32 to vector<1x256xi32>
    %27 = arith.cmpi eq, %23, %26 : vector<1x256xi32>
    %c0_11 = arith.constant 0 : index
    %c111 = arith.constant 111 : index
    %28 = vector.load %arg7[%c0_11, %c111] : memref<32x401xbf16, #tpu.memory_space<vmem>>, vector<32x256xbf16>
    %cst_12 = arith.constant 0.000000e+00 : bf16
    %29 = vector.shape_cast %25 : vector<1x256xi1> to vector<1x256xi1>
    %30 = vector.broadcast %29 : vector<1x256xi1> to vector<32x256xi1>
    %31 = vector.broadcast %cst_12 : bf16 to vector<32x256xbf16>
    %32 = arith.select %30, %31, %28 : vector<32x256xi1>, vector<32x256xbf16>
    %c0_13 = arith.constant 0 : index
    %c0_14 = arith.constant 0 : index
    %33 = vector.load %arg8[%c0_13, %c0_14] : memref<288x256xbf16, #tpu.memory_space<vmem>>, vector<32x256xbf16>
    tpu.vector_store %arg8[%c0_13, %c0_14], %32 {strides = array<i32>} : memref<288x256xbf16, #tpu.memory_space<vmem>>, vector<32x256xbf16>,
    %c0_15 = arith.constant 0 : index
    %c112 = arith.constant 112 : index
    %34 = vector.load %arg7[%c0_15, %c112] : memref<32x401xbf16, #tpu.memory_space<vmem>>, vector<32x256xbf16>
    %c32 = arith.constant 32 : index
    %c0_16 = arith.constant 0 : index
    %35 = vector.load %arg8[%c32, %c0_16] : memref<288x256xbf16, #tpu.memory_space<vmem>>, vector<32x256xbf16>
    tpu.vector_store %arg8[%c32, %c0_16], %34 {strides = array<i32>} : memref<288x256xbf16, #tpu.memory_space<vmem>>, vector<32x256xbf16>,
    %c0_17 = arith.constant 0 : index
    %c113 = arith.constant 113 : index
    %36 = vector.load %arg7[%c0_17, %c113] : memref<32x401xbf16, #tpu.memory_space<vmem>>, vector<32x256xbf16>
    %cst_18 = arith.constant 0.000000e+00 : bf16
    %37 = vector.shape_cast %27 : vector<1x256xi1> to vector<1x256xi1>
    %38 = vector.broadcast %37 : vector<1x256xi1> to vector<32x256xi1>
    %39 = vector.broadcast %cst_18 : bf16 to vector<32x256xbf16>
    %40 = arith.select %38, %39, %36 : vector<32x256xi1>, vector<32x256xbf16>
    %c64 = arith.constant 64 : index
    %c0_19 = arith.constant 0 : index
    %41 = vector.load %arg8[%c64, %c0_19] : memref<288x256xbf16, #tpu.memory_space<vmem>>, vector<32x256xbf16>
    tpu.vector_store %arg8[%c64, %c0_19], %40 {strides = array<i32>} : memref<288x256xbf16, #tpu.memory_space<vmem>>, vector<32x256xbf16>,
    %c0_20 = arith.constant 0 : index
    %c127 = arith.constant 127 : index
    %42 = vector.load %arg7[%c0_20, %c127] : memref<32x401xbf16, #tpu.memory_space<vmem>>, vector<32x256xbf16>
    %cst_21 = arith.constant 0.000000e+00 : bf16
    %43 = vector.shape_cast %25 : vector<1x256xi1> to vector<1x256xi1>
    %44 = vector.broadcast %43 : vector<1x256xi1> to vector<32x256xi1>
    %45 = vector.broadcast %cst_21 : bf16 to vector<32x256xbf16>
    %46 = arith.select %44, %45, %42 : vector<32x256xi1>, vector<32x256xbf16>
    %c96 = arith.constant 96 : index
    %c0_22 = arith.constant 0 : index
    %47 = vector.load %arg8[%c96, %c0_22] : memref<288x256xbf16, #tpu.memory_space<vmem>>, vector<32x256xbf16>
    tpu.vector_store %arg8[%c96, %c0_22], %46 {strides = array<i32>} : memref<288x256xbf16, #tpu.memory_space<vmem>>, vector<32x256xbf16>,
    %c0_23 = arith.constant 0 : index
    %c128_24 = arith.constant 128 : index
    %48 = vector.load %arg7[%c0_23, %c128_24] : memref<32x401xbf16, #tpu.memory_space<vmem>>, vector<32x256xbf16>
    %c128_25 = arith.constant 128 : index
    %c0_26 = arith.constant 0 : index
    %49 = vector.load %arg8[%c128_25, %c0_26] : memref<288x256xbf16, #tpu.memory_space<vmem>>, vector<32x256xbf16>
    tpu.vector_store %arg8[%c128_25, %c0_26], %48 {strides = array<i32>} : memref<288x256xbf16, #tpu.memory_space<vmem>>, vector<32x256xbf16>,
    %c0_27 = arith.constant 0 : index
    %c129 = arith.constant 129 : index
    %50 = vector.load %arg7[%c0_27, %c129] : memref<32x401xbf16, #tpu.memory_space<vmem>>, vector<32x256xbf16>
    %cst_28 = arith.constant 0.000000e+00 : bf16
    %51 = vector.shape_cast %27 : vector<1x256xi1> to vector<1x256xi1>
    %52 = vector.broadcast %51 : vector<1x256xi1> to vector<32x256xi1>
    %53 = vector.broadcast %cst_28 : bf16 to vector<32x256xbf16>
    %54 = arith.select %52, %53, %50 : vector<32x256xi1>, vector<32x256xbf16>
    %c160 = arith.constant 160 : index
    %c0_29 = arith.constant 0 : index
    %55 = vector.load %arg8[%c160, %c0_29] : memref<288x256xbf16, #tpu.memory_space<vmem>>, vector<32x256xbf16>
    tpu.vector_store %arg8[%c160, %c0_29], %54 {strides = array<i32>} : memref<288x256xbf16, #tpu.memory_space<vmem>>, vector<32x256xbf16>,
    %c0_30 = arith.constant 0 : index
    %c143 = arith.constant 143 : index
    %56 = vector.load %arg7[%c0_30, %c143] : memref<32x401xbf16, #tpu.memory_space<vmem>>, vector<32x256xbf16>
    %cst_31 = arith.constant 0.000000e+00 : bf16
    %57 = vector.shape_cast %25 : vector<1x256xi1> to vector<1x256xi1>
    %58 = vector.broadcast %57 : vector<1x256xi1> to vector<32x256xi1>
    %59 = vector.broadcast %cst_31 : bf16 to vector<32x256xbf16>
    %60 = arith.select %58, %59, %56 : vector<32x256xi1>, vector<32x256xbf16>
    %c192 = arith.constant 192 : index
    %c0_32 = arith.constant 0 : index
    %61 = vector.load %arg8[%c192, %c0_32] : memref<288x256xbf16, #tpu.memory_space<vmem>>, vector<32x256xbf16>
    tpu.vector_store %arg8[%c192, %c0_32], %60 {strides = array<i32>} : memref<288x256xbf16, #tpu.memory_space<vmem>>, vector<32x256xbf16>,
    %c0_33 = arith.constant 0 : index
    %c144 = arith.constant 144 : index
    %62 = vector.load %arg7[%c0_33, %c144] : memref<32x401xbf16, #tpu.memory_space<vmem>>, vector<32x256xbf16>
    %c224 = arith.constant 224 : index
    %c0_34 = arith.constant 0 : index
    %63 = vector.load %arg8[%c224, %c0_34] : memref<288x256xbf16, #tpu.memory_space<vmem>>, vector<32x256xbf16>
    tpu.vector_store %arg8[%c224, %c0_34], %62 {strides = array<i32>} : memref<288x256xbf16, #tpu.memory_space<vmem>>, vector<32x256xbf16>,
    %c0_35 = arith.constant 0 : index
    %c145 = arith.constant 145 : index
    %64 = vector.load %arg7[%c0_35, %c145] : memref<32x401xbf16, #tpu.memory_space<vmem>>, vector<32x256xbf16>
    %cst_36 = arith.constant 0.000000e+00 : bf16
    %65 = vector.shape_cast %27 : vector<1x256xi1> to vector<1x256xi1>
    %66 = vector.broadcast %65 : vector<1x256xi1> to vector<32x256xi1>
    %67 = vector.broadcast %cst_36 : bf16 to vector<32x256xbf16>
    %68 = arith.select %66, %67, %64 : vector<32x256xi1>, vector<32x256xbf16>
    %c256 = arith.constant 256 : index
    %c0_37 = arith.constant 0 : index
    %69 = vector.load %arg8[%c256, %c0_37] : memref<288x256xbf16, #tpu.memory_space<vmem>>, vector<32x256xbf16>
    tpu.vector_store %arg8[%c256, %c0_37], %68 {strides = array<i32>} : memref<288x256xbf16, #tpu.memory_space<vmem>>, vector<32x256xbf16>,
    %c0_38 = arith.constant 0 : index
    %c0_39 = arith.constant 0 : index
    %70 = vector.load %arg4[%c0_38, %c0_39] : memref<32x288xbf16, #tpu.memory_space<vmem>>, vector<32x288xbf16>
    %c0_40 = arith.constant 0 : index
    %c0_41 = arith.constant 0 : index
    %71 = vector.load %arg8[%c0_40, %c0_41] : memref<288x256xbf16, #tpu.memory_space<vmem>>, vector<288x256xbf16>
    %cst_42 = arith.constant dense<0.000000e+00> : vector<32x256xf32>
    %72 = tpu.matmul %70, %71, %cst_42 {dimension_numbers = #tpu.dot_dimension_numbers<[1], [0], [0], [1], [0, 0, 1, 1], [], []>} : vector<32x288xbf16>, vector<288x256xbf16>, vector<32x256xf32> -> vector<32x256xf32>
    %c0_43 = arith.constant 0 : index
    %c0_44 = arith.constant 0 : index
    %73 = vector.load %arg5[%c0_43, %c0_44] : memref<32x1xf32, #tpu.memory_space<vmem>>, vector<32x1xf32>
    %74 = vector.broadcast %73 : vector<32x1xf32> to vector<32x256xf32>
    %75 = arith.addf %72, %74 : vector<32x256xf32>
    %c0_45 = arith.constant 0 : index
    %c0_46 = arith.constant 0 : index
    %c0_47 = arith.constant 0 : index
    %76 = vector.load %arg6[%c0_45, %c0_46, %c0_47] : memref<1x32x256xf32, #tpu.memory_space<vmem>>, vector<1x32x256xf32>
    %77 = vector.shape_cast %76 : vector<1x32x256xf32> to vector<32x256xf32>
    %78 = vector.shape_cast %75 : vector<32x256xf32> to vector<1x32x256xf32>
    tpu.vector_store %arg6[%c0_45, %c0_46, %c0_47], %78 {strides = array<i32>} : memref<1x32x256xf32, #tpu.memory_space<vmem>>, vector<1x32x256xf32>,
    return
  }
  func.func @transform_0(%arg0: i32, %arg1: i32, %arg2: i32) -> (i32, i32, i32) {
    %c0_i32 = arith.constant 0 : i32
    %c0_i32_0 = arith.constant 0 : i32
    return %arg0, %c0_i32, %arg2 : i32, i32, i32
  }
  func.func @transform_1(%arg0: i32, %arg1: i32, %arg2: i32) -> (i32, i32) {
    %c0_i32 = arith.constant 0 : i32
    %c0_i32_0 = arith.constant 0 : i32
    return %arg1, %c0_i32 : i32, i32
  }
  func.func @transform_2(%arg0: i32, %arg1: i32, %arg2: i32) -> (i32, i32) {
    %c0_i32 = arith.constant 0 : i32
    %c0_i32_0 = arith.constant 0 : i32
    return %arg1, %c0_i32 : i32, i32
  }
  func.func @transform_3(%arg0: i32, %arg1: i32, %arg2: i32) -> (i32, i32, i32) {
    %c0_i32 = arith.constant 0 : i32
    return %arg0, %arg1, %arg2 : i32, i32, i32
  }
}

</mosaic_0001>

<llo_original>
// kernel: sscbn_forward.3
$region0: #{sscbn_forward.3}
  #allocation0 [shape = 'u32[]', space=smem, size = 0x4, offset = 0x4, fixed_abs, tag = 'smem constant byte address 0x4 - core index']
  #allocation1 [shape = 'u32[144,128]{1,0:T(1,128)}', space=vmem, size = 0x12000, scoped, tag = 'internal scratch']
  %s0 = inlined_call_operand.hbm [shape: f32[2,32,256], index: 0, kind: input, shape index: {}]
  %s1 = inlined_call_operand.hbm [shape: f32[2,32,1], index: 1, kind: output, shape index: {0}]
  %s2 = inlined_call_operand.hbm [shape: f32[2,32,1], index: 2, kind: output, shape index: {1}]
  %3 = xla_tuple %s1, %s2
  %s4 = sld [smem:[#allocation0]]
  $region53: #{sscbn_forward.3} parent=0
    _
  %s6 = ssub.s32 1, %s4
  %s7 = scalar_select 0, %s6, %s4
  $region1: #{sscbn_forward.3} parent=0
    #allocation2 [shape = 'u8[65536]{0}', space=vmem, size = 0x10000, scoped, tag = 'input window, operand 0']
    #allocation3 [shape = 's32[2]{0}', space=sflag, size = 0x8, scoped, tag = 'scoped memory for sscbn_forward.3']
    #allocation4 [shape = 's32[2]{0}', space=sflag, size = 0x8, scoped, tag = 'scoped memory for sscbn_forward.3']
    #allocation5 [shape = 'u8[32768]{0}', space=vmem, size = 0x8000, scoped, tag = 'output window, operand 0']
    #allocation6 [shape = 'u8[32768]{0}', space=vmem, size = 0x8000, scoped, tag = 'output window, operand 1']
    #allocation7 [shape = 's32[2]{0}', space=sflag, size = 0x8, scoped, tag = 'scoped memory for sscbn_forward.3']
    %8 = vsyncpa [#allocation3], 0
    %s9 = scalar_lea.sflag [#allocation3], 1
    %10 = vsyncpa %s9, 0
    %11 = vsyncpa [#allocation4], 0
    %s12 = scalar_lea.sflag [#allocation4], 1
    %13 = vsyncpa %s12, 0
    %14 = vsyncpa [#allocation7], 0
    %s15 = scalar_lea.sflag [#allocation7], 1
    %16 = vsyncpa %s15, 0
    loop: start=0, step=1, limit=4
    $region2: #{sscbn_forward.3} parent=1 // loop_pre_header
      _
    $region3: #{sscbn_forward.3} parent=1 // loop_header
      %s18 = sphi 0, %s22
      %p19 = scmp.ge.s32.totalorder %s18, 4
      %s25 = sphi 0, %s37
      %s26 = sphi 0, %s33
      %s27 = sphi 0, %s25
      %s28 = sphi 0, %s26
      %s29 = sphi 0, %s27
      %s30 = sphi 0, %s28
      %s42 = sphi 0, %s44
      %s45 = sphi 0, %s42
      %s46 = sphi 0, %s45
      %s62 = sphi 0, %s46
      %s68 = sphi 0, %s70
      %s71 = sphi 0, %s68
      %s72 = sphi 0, %s71
      %s88 = sphi 0, %s72
      %s94 = sphi 0, %s96
      %s97 = sphi 0, %s94
      %s98 = sphi 0, %s97
      %s114 = sphi 0, %s98
    $region4: #{sscbn_forward.3} parent=1 // loop_header_branch
      %21 = sbr.rel (%p19) target = $region8
    $region5: #{sscbn_forward.3} parent=1 // loop_body
      %s23 = ssub.s32 %s18, 1
      %s24 = ssub.s32 %s18, 2
      %s31 = sadd.s32 1, %s26
      %p32 = scmp.ge.s32.totalorder %s31, 1
      %s33 = scalar_select %p32, 0, %s31
      %s34 = sadd.s32 1, %s25
      %s35 = scalar_select %p32, %s34, %s25
      %p36 = scmp.ge.s32.totalorder %s35, 2
      %s37 = scalar_select %p36, 0, %s35
      %s38 = ssub.s32 %s25, %s37
      %s39 = ssub.s32 %s26, %s33
      %s40 = sor.u32 %s38, %s39
      %p41 = scmp.eq.s32.totalorder %s40, 0
      %s43 = sadd.s32 %s42, 1
      %s44 = scalar_select %p41, %s42, %s43
      %p47 = pneg %p41
      %p48 = scmp.eq.s32.totalorder %s18, 1
      %p49 = por %p47, %p48
      %p50 = scmp.ne.s32.totalorder %s42, %s45
      %p51 = scmp.eq.s32.totalorder %s18, 0
      %p52 = por %p50, %p51
      %p53 = scmp.ne.s32.totalorder %s42, %s45
      %p54 = scmp.eq.s32.totalorder %s23, 1
      %p55 = por %p53, %p54
      %p56 = scmp.ne.s32.totalorder %s45, %s46
      %p57 = scmp.eq.s32.totalorder %s23, 0
      %p58 = por %p56, %p57
      %p59 = scmp.ne.s32.totalorder %s45, %s46
      %p60 = scmp.eq.s32.totalorder %s24, 1
      %p61 = por %p59, %p60
      %p63 = scmp.ne.s32.totalorder %s46, %s62
      %p64 = scmp.eq.s32.totalorder %s24, 0
      %p65 = por %p63, %p64
      %s66 = ssub.s32 %s25, %s37
      %p67 = scmp.eq.s32.totalorder %s66, 0
      %s69 = sadd.s32 %s68, 1
      %s70 = scalar_select %p67, %s68, %s69
      %p73 = pneg %p67
      %p74 = scmp.eq.s32.totalorder %s18, 1
      %p75 = por %p73, %p74
      %p76 = scmp.ne.s32.totalorder %s68, %s71
      %p77 = scmp.eq.s32.totalorder %s18, 0
      %p78 = por %p76, %p77
      %p79 = scmp.ne.s32.totalorder %s68, %s71
      %p80 = scmp.eq.s32.totalorder %s23, 1
      %p81 = por %p79, %p80
      %p82 = scmp.ne.s32.totalorder %s71, %s72
      %p83 = scmp.eq.s32.totalorder %s23, 0
      %p84 = por %p82, %p83
      %p85 = scmp.ne.s32.totalorder %s71, %s72
      %p86 = scmp.eq.s32.totalorder %s24, 1
      %p87 = por %p85, %p86
      %p89 = scmp.ne.s32.totalorder %s72, %s88
      %p90 = scmp.eq.s32.totalorder %s24, 0
      %p91 = por %p89, %p90
      %s92 = ssub.s32 %s25, %s37
      %p93 = scmp.eq.s32.totalorder %s92, 0
      %s95 = sadd.s32 %s94, 1
      %s96 = scalar_select %p93, %s94, %s95
      %p99 = pneg %p93
      %p100 = scmp.eq.s32.totalorder %s18, 1
      %p101 = por %p99, %p100
      %p102 = scmp.ne.s32.totalorder %s94, %s97
      %p103 = scmp.eq.s32.totalorder %s18, 0
      %p104 = por %p102, %p103
      %p105 = scmp.ne.s32.totalorder %s94, %s97
      %p106 = scmp.eq.s32.totalorder %s23, 1
      %p107 = por %p105, %p106
      %p108 = scmp.ne.s32.totalorder %s97, %s98
      %p109 = scmp.eq.s32.totalorder %s23, 0
      %p110 = por %p108, %p109
      %p111 = scmp.ne.s32.totalorder %s97, %s98
      %p112 = scmp.eq.s32.totalorder %s24, 1
      %p113 = por %p111, %p112
      %p115 = scmp.ne.s32.totalorder %s98, %s114
      %p116 = scmp.eq.s32.totalorder %s24, 0
      %p117 = por %p115, %p116
      %p118 = scmp.le.s32.totalorder 1, %s18
      %p119 = scmp.lt.s32.totalorder %s18, 3
      %p120 = pnand %p118, %p119
      %p121 = pneg %p120
      // Predicated region
      $region9: #{sscbn_forward.3} parent=5 // pred_check
        _
      $region10: #{sscbn_forward.3} parent=5 // pred_check_branch
        %123 = sbr.rel (%p120) target = $region12
      $region11: #{sscbn_forward.3} parent=5 // pred_region
        %s124 = ssub.s32 %s18, 1
      $region12: #{sscbn_forward.3} parent=5 // pred_fallthru
        _
      %p125 = scmp.lt.s32.totalorder %s18, 2
      // Predicated region
      $region13: #{sscbn_forward.3} parent=5 // pred_check
        %p126 = pneg %p125
      $region14: #{sscbn_forward.3} parent=5 // pred_check_branch
        %128 = sbr.rel (%p126) target = $region16
      $region15: #{sscbn_forward.3} parent=5 // pred_region
        // Predicated region
        $region17: #{sscbn_forward.3} parent=15 // pred_check
          %p129 = pneg %p52
        $region18: #{sscbn_forward.3} parent=15 // pred_check_branch
          %131 = sbr.rel (%p129) target = $region20
        $region19: #{sscbn_forward.3} parent=15 // pred_region
          %s132 = sand.u32 %s42, 1
          %s133 = scalar_lea.sflag [#allocation3], %s132
          %s134 = sand.u32 %s42, 1
          %s135 = smul.addr %s134, 64
          %s136 = scalar_lea.vmem [#allocation2], %s135
          %s137 = smul.u32 2, %s26
          %s139 = ssub.s32 1024, 1024
          %140 = vsyncadd %s133, %s139
          %s141 = smul.addr %s25, 8
          %s142 = sadd.s32 %s137, %s141
          %s143 = smul.addr %s142, 128
          %s144 = scalar_lea.hbm %s0, %s143
          %s145 = sshll.u32 %s136, 4
          %s146 = int_to_ptr.vmem [resolvable:$true] %s145
          %151 = dma.hbm_to_vmem [thread:$0]  %s144, 1024, %s146, %s133, 256, 256, 16
        $region20: #{sscbn_forward.3} parent=15 // pred_fallthru
          _
      $region16: #{sscbn_forward.3} parent=5 // pred_fallthru
        _
      %p152 = scmp.le.s32.totalorder 1, %s18
      %p153 = scmp.lt.s32.totalorder %s18, 3
      %p154 = pnand %p152, %p153
      %p155 = pneg %p154
      // Predicated region
      $region21: #{sscbn_forward.3} parent=5 // pred_check
        _
      $region22: #{sscbn_forward.3} parent=5 // pred_check_branch
        %157 = sbr.rel (%p154) target = $region24
      $region23: #{sscbn_forward.3} parent=5 // pred_region
        %s158 = ssub.s32 %s18, 1
        %s159 = sand.u32 %s45, 1
        %s160 = scalar_lea.sflag [#allocation3], %s159
        %s161 = sand.u32 %s45, 1
        %s162 = smul.addr %s161, 64
        %s163 = scalar_lea.vmem [#allocation2], %s162
        // Predicated region
        $region25: #{sscbn_forward.3} parent=23 // pred_check
          %p164 = pneg %p58
        $region26: #{sscbn_forward.3} parent=23 // pred_check_branch
          %166 = sbr.rel (%p164) target = $region28
        $region27: #{sscbn_forward.3} parent=23 // pred_region
          %167 = dma.done %s160, 1024
        $region28: #{sscbn_forward.3} parent=23 // pred_fallthru
          _
        %s168 = sand.u32 %s45, 1
        %s169 = scalar_lea.sflag [#allocation3], %s168
        %s170 = sand.u32 %s45, 1
        %s171 = smul.addr %s170, 64
        %s172 = scalar_lea.vmem [#allocation2], %s171
        %p173 = pneg %p58
        %p174 = pneg %p55
        %p175 = pneg %p84
        %p176 = pneg %p81
        %s177 = sand.u32 %s71, 1
        %s178 = scalar_lea.sflag [#allocation4], %s177
        %s179 = sand.u32 %s71, 1
        %s180 = smul.addr %s179, 32
        %s181 = scalar_lea.vmem [#allocation5], %s180
        %p182 = pneg %p110
        %p183 = pneg %p107
        %s184 = sand.u32 %s97, 1
        %s185 = scalar_lea.sflag [#allocation7], %s184
        %s186 = sand.u32 %s97, 1
        %s187 = smul.addr %s186, 32
        %s188 = scalar_lea.vmem [#allocation6], %s187
        %s189 = smul.u32 2, %s28
        %p190 = scmp.eq.s32.totalorder %s28, 0
        // Predicated region
        $region29: #{sscbn_forward.3} parent=23 // pred_check
          %p191 = pneg %p190
        $region30: #{sscbn_forward.3} parent=23 // pred_check_branch
          %193 = sbr.rel (%p191) target = $region32
        $region31: #{sscbn_forward.3} parent=23 // pred_region
          %vm194 = vcmask 7168
          %195 = vst.msk [vmem:[%s181] sm:$0xff] %vm194, 0.0
          %196 = vst.msk [vmem:[%s181 + $0x8] sm:$0xff] %vm194, 0.0
          %197 = vst.msk [vmem:[%s181 + $0x10] sm:$0xff] %vm194, 0.0
          %198 = vst.msk [vmem:[%s181 + $0x18] sm:$0xff] %vm194, 0.0
          %199 = vst.msk [vmem:[%s188] sm:$0xff] %vm194, 0.0
          %200 = vst.msk [vmem:[%s188 + $0x8] sm:$0xff] %vm194, 0.0
          %201 = vst.msk [vmem:[%s188 + $0x10] sm:$0xff] %vm194, 0.0
          %202 = vst.msk [vmem:[%s188 + $0x18] sm:$0xff] %vm194, 0.0
        $region32: #{sscbn_forward.3} parent=23 // pred_fallthru
          _
        %v203 = vld [vmem:[%s163] sm:$0xff]
        %v204 = vld [vmem:[%s163 + $0x8] sm:$0xff]
        %v205 = vld [vmem:[%s163 + $0x10] sm:$0xff]
        %v206 = vld [vmem:[%s163 + $0x18] sm:$0xff]
        %v207 = vld [vmem:[%s163 + $0x20] sm:$0xff]
        %v208 = vld [vmem:[%s163 + $0x28] sm:$0xff]
        %v209 = vld [vmem:[%s163 + $0x30] sm:$0xff]
        %v210 = vld [vmem:[%s163 + $0x38] sm:$0xff]
        %v211 = vld [vmem:[%s181] sm:$0xff]
        %v212 = vld [vmem:[%s181 + $0x8] sm:$0xff]
        %v213 = vld [vmem:[%s181 + $0x10] sm:$0xff]
        %v214 = vld [vmem:[%s181 + $0x18] sm:$0xff]
        %v215 = vadd.f32 %v203, %v204
        %216 = vadd.xlane.f32.xlu0 %v215
        %v217 = vpop.xlane.xlu0 %216
        %v218 = vadd.f32 %v205, %v206
        %219 = vadd.xlane.f32.xlu0 %v218
        %v220 = vpop.xlane.xlu0 %219
        %v221 = vadd.f32 %v207, %v208
        %222 = vadd.xlane.f32.xlu0 %v221
        %v223 = vpop.xlane.xlu0 %222
        %v224 = vadd.f32 %v209, %v210
        %225 = vadd.xlane.f32.xlu0 %v224
        %v226 = vpop.xlane.xlu0 %225
        %v227 = vadd.f32 %v211, %v217
        %v228 = vadd.f32 %v212, %v220
        %v229 = vadd.f32 %v213, %v223
        %v230 = vadd.f32 %v214, %v226
        %vm231 = vcmask 7168
        %232 = vst.msk [vmem:[%s181] sm:$0xff] %vm231, %v227
        %233 = vst.msk [vmem:[%s181 + $0x8] sm:$0xff] %vm231, %v228
        %234 = vst.msk [vmem:[%s181 + $0x10] sm:$0xff] %vm231, %v229
        %235 = vst.msk [vmem:[%s181 + $0x18] sm:$0xff] %vm231, %v230
        %v236 = vld [vmem:[%s188] sm:$0xff]
        %v237 = vld [vmem:[%s188 + $0x8] sm:$0xff]
        %v238 = vld [vmem:[%s188 + $0x10] sm:$0xff]
        %v239 = vld [vmem:[%s188 + $0x18] sm:$0xff]
        %v240 = vmul.f32 %v203, %v203
        %v241 = vmul.f32 %v204, %v204
        %v242 = vmul.f32 %v205, %v205
        %v243 = vmul.f32 %v206, %v206
        %v244 = vmul.f32 %v207, %v207
        %v245 = vmul.f32 %v208, %v208
        %v246 = vmul.f32 %v209, %v209
        %v247 = vmul.f32 %v210, %v210
        %v248 = vadd.f32 %v240, %v241
        %249 = vadd.xlane.f32.xlu0 %v248
        %v250 = vpop.xlane.xlu0 %249
        %v251 = vadd.f32 %v242, %v243
        %252 = vadd.xlane.f32.xlu0 %v251
        %v253 = vpop.xlane.xlu0 %252
        %v254 = vadd.f32 %v244, %v245
        %255 = vadd.xlane.f32.xlu0 %v254
        %v256 = vpop.xlane.xlu0 %255
        %v257 = vadd.f32 %v246, %v247
        %258 = vadd.xlane.f32.xlu0 %v257
        %v259 = vpop.xlane.xlu0 %258
        %v260 = vadd.f32 %v236, %v250
        %v261 = vadd.f32 %v237, %v253
        %v262 = vadd.f32 %v238, %v256
        %v263 = vadd.f32 %v239, %v259
        %264 = vst.msk [vmem:[%s188] sm:$0xff] %vm231, %v260
        %265 = vst.msk [vmem:[%s188 + $0x8] sm:$0xff] %vm231, %v261
        %266 = vst.msk [vmem:[%s188 + $0x10] sm:$0xff] %vm231, %v262
        %267 = vst.msk [vmem:[%s188 + $0x18] sm:$0xff] %vm231, %v263
        %s268 = sand.u32 %s71, 1
        %s269 = scalar_lea.sflag [#allocation4], %s268
        %s270 = sand.u32 %s71, 1
        %s271 = smul.addr %s270, 32
        %s272 = scalar_lea.vmem [#allocation5], %s271
        %s273 = sand.u32 %s97, 1
        %s274 = scalar_lea.sflag [#allocation7], %s273
        %s275 = sand.u32 %s97, 1
        %s276 = smul.addr %s275, 32
        %s277 = scalar_lea.vmem [#allocation6], %s276
        // Predicated region
        $region33: #{sscbn_forward.3} parent=23 // pred_check
          %p278 = pneg %p81
        $region34: #{sscbn_forward.3} parent=23 // pred_check_branch
          %280 = sbr.rel (%p278) target = $region36
        $region35: #{sscbn_forward.3} parent=23 // pred_region
          %s282 = ssub.s32 512, 512
          %283 = vsyncadd %s269, %s282
          %s284 = smul.addr %s27, 4
          %s285 = smul.addr %s284, 128
          %s286 = scalar_lea.hbm %s1, %s285
          %s287 = sshll.u32 %s272, 4
          %s288 = int_to_ptr.vmem [resolvable:$true] %s287
          %293 = dma.vmem_to_hbm [thread:$0]  %s288, 512, %s286, %s269, 128, 128, 8
        $region36: #{sscbn_forward.3} parent=23 // pred_fallthru
          _
        // Predicated region
        $region37: #{sscbn_forward.3} parent=23 // pred_check
          %p294 = pneg %p107
        $region38: #{sscbn_forward.3} parent=23 // pred_check_branch
          %296 = sbr.rel (%p294) target = $region40
        $region39: #{sscbn_forward.3} parent=23 // pred_region
          %s298 = ssub.s32 512, 512
          %299 = vsyncadd %s274, %s298
          %s300 = smul.addr %s27, 4
          %s301 = smul.addr %s300, 128
          %s302 = scalar_lea.hbm %s2, %s301
          %s303 = sshll.u32 %s277, 4
          %s304 = int_to_ptr.vmem [resolvable:$true] %s303
          %309 = dma.vmem_to_hbm [thread:$0]  %s304, 512, %s302, %s274, 128, 128, 8
        $region40: #{sscbn_forward.3} parent=23 // pred_fallthru
          _
      $region24: #{sscbn_forward.3} parent=5 // pred_fallthru
        _
      %p310 = scmp.le.s32.totalorder 2, %s18
      // Predicated region
      $region41: #{sscbn_forward.3} parent=5 // pred_check
        %p311 = pneg %p310
      $region42: #{sscbn_forward.3} parent=5 // pred_check_branch
        %313 = sbr.rel (%p311) target = $region44
      $region43: #{sscbn_forward.3} parent=5 // pred_region
        %s314 = ssub.s32 %s18, 2
        // Predicated region
        $region45: #{sscbn_forward.3} parent=43 // pred_check
          %p315 = pneg %p87
        $region46: #{sscbn_forward.3} parent=43 // pred_check_branch
          %317 = sbr.rel (%p315) target = $region48
        $region47: #{sscbn_forward.3} parent=43 // pred_region
          %s318 = sand.u32 %s72, 1
          %s319 = scalar_lea.sflag [#allocation4], %s318
          %s320 = sand.u32 %s72, 1
          %s321 = smul.addr %s320, 32
          %s322 = scalar_lea.vmem [#allocation5], %s321
          %323 = dma.done %s319, 512
        $region48: #{sscbn_forward.3} parent=43 // pred_fallthru
          _
        // Predicated region
        $region49: #{sscbn_forward.3} parent=43 // pred_check
          %p324 = pneg %p113
        $region50: #{sscbn_forward.3} parent=43 // pred_check_branch
          %326 = sbr.rel (%p324) target = $region52
        $region51: #{sscbn_forward.3} parent=43 // pred_region
          %s327 = sand.u32 %s98, 1
          %s328 = scalar_lea.sflag [#allocation7], %s327
          %s329 = sand.u32 %s98, 1
          %s330 = smul.addr %s329, 32
          %s331 = scalar_lea.vmem [#allocation6], %s330
          %332 = dma.done %s328, 512
        $region52: #{sscbn_forward.3} parent=43 // pred_fallthru
          _
      $region44: #{sscbn_forward.3} parent=5 // pred_fallthru
        _
    $region6: #{sscbn_forward.3} parent=1 // loop_footer
      %s22 = sadd.s32 1, %s18
    $region7: #{sscbn_forward.3} parent=1 // loop_footer_branch
      %17 = sbr.rel target = $region3
    $region8: #{sscbn_forward.3} parent=1 // loop_exit
      _
    %333 = vsyncpa [#allocation3], 1
    %s334 = scalar_lea.sflag [#allocation3], 1
    %335 = vsyncpa %s334, 1
    %336 = vsyncpa [#allocation4], 1
    %s337 = scalar_lea.sflag [#allocation4], 1
    %338 = vsyncpa %s337, 1
    %339 = vsyncpa [#allocation7], 1
    %s340 = scalar_lea.sflag [#allocation7], 1
    %341 = vsyncpa %s340, 1

// kernel: sscbn_forward.4
$region0: #{sscbn_forward.4}
  #allocation0 [shape = 'u32[]', space=smem, size = 0x4, offset = 0x4, fixed_abs, tag = 'smem constant byte address 0x4 - core index']
  #allocation1 [shape = 'u32[144,128]{1,0:T(1,128)}', space=vmem, size = 0x12000, scoped, tag = 'internal scratch']
  %s0 = inlined_call_operand.hbm [shape: f32[2,32,256], index: 0, kind: input, shape index: {}]
  %s1 = inlined_call_operand.hbm [shape: f32[32,1], index: 1, kind: input, shape index: {}]
  %s2 = inlined_call_operand.hbm [shape: f32[32,1], index: 2, kind: input, shape index: {}]
  %s3 = inlined_call_operand.hbm [shape: f32[2,1,256], index: 3, kind: input, shape index: {}]
  %s4 = inlined_call_operand.hbm [shape: f32[2,32,1], index: 4, kind: input, shape index: {}]
  %s5 = inlined_call_operand.hbm [shape: f32[2,32,1], index: 5, kind: input, shape index: {}]
  %s6 = inlined_call_operand.hbm [shape: bf16[2,32,256], index: 6, kind: output, shape index: {}]
  %s7 = sld [smem:[#allocation0]]
  $region81: #{sscbn_forward.4} parent=0
    _
  %s9 = ssub.s32 1, %s7
  %s10 = scalar_select 0, %s9, %s7
  $region1: #{sscbn_forward.4} parent=0
    #allocation2 [shape = 'u8[65536]{0}', space=vmem, size = 0x10000, scoped, tag = 'input window, operand 0']
    #allocation3 [shape = 's32[2]{0}', space=sflag, size = 0x8, scoped, tag = 'scoped memory for sscbn_forward.4']
    #allocation4 [shape = 's32[2]{0}', space=sflag, size = 0x8, scoped, tag = 'scoped memory for sscbn_forward.4']
    #allocation5 [shape = 'u8[16384]{0}', space=vmem, size = 0x4000, scoped, tag = 'input window, operand 1, single buffered']
    #allocation6 [shape = 's32[1]{0}', space=sflag, size = 0x4, scoped, tag = 'scoped memory for sscbn_forward.4']
    #allocation7 [shape = 'u8[16384]{0}', space=vmem, size = 0x4000, scoped, tag = 'input window, operand 2, single buffered']
    #allocation8 [shape = 'u8[2048]{0}', space=vmem, size = 0x800, scoped, tag = 'input window, operand 3']
    #allocation9 [shape = 's32[2]{0}', space=sflag, size = 0x8, scoped, tag = 'scoped memory for sscbn_forward.4']
    #allocation10 [shape = 'u8[32768]{0}', space=vmem, size = 0x8000, scoped, tag = 'input window, operand 4']
    #allocation11 [shape = 'u8[32768]{0}', space=vmem, size = 0x8000, scoped, tag = 'input window, operand 5']
    #allocation12 [shape = 's32[2]{0}', space=sflag, size = 0x8, scoped, tag = 'scoped memory for sscbn_forward.4']
    #allocation13 [shape = 'u8[32768]{0}', space=vmem, size = 0x8000, scoped, tag = 'output window, operand 0']
    %11 = vsyncpa [#allocation3], 0
    %s12 = scalar_lea.sflag [#allocation3], 1
    %13 = vsyncpa %s12, 0
    %14 = vsyncpa [#allocation6], 0
    %15 = vsyncpa [#allocation9], 0
    %s16 = scalar_lea.sflag [#allocation9], 1
    %17 = vsyncpa %s16, 0
    %18 = vsyncpa [#allocation12], 0
    %s19 = scalar_lea.sflag [#allocation12], 1
    %20 = vsyncpa %s19, 0
    %21 = vsyncpa [#allocation4], 0
    %s22 = scalar_lea.sflag [#allocation4], 1
    %23 = vsyncpa %s22, 0
    loop: start=0, step=1, limit=4
    $region2: #{sscbn_forward.4} parent=1 // loop_pre_header
      _
    $region3: #{sscbn_forward.4} parent=1 // loop_header
      %s25 = sphi 0, %s29
      %p26 = scmp.ge.s32.totalorder %s25, 4
      %s32 = sphi 0, %s44
      %s33 = sphi 0, %s40
      %s34 = sphi 0, %s32
      %s35 = sphi 0, %s33
      %s36 = sphi 0, %s34
      %s37 = sphi 0, %s35
      %s49 = sphi 0, %s51
      %s52 = sphi 0, %s49
      %s53 = sphi 0, %s52
      %s69 = sphi 0, %s53
      %s73 = sphi 0, %s73
      %s75 = sphi 0, %s73
      %s76 = sphi 0, %s75
      %s90 = sphi 0, %s76
      %s94 = sphi 0, %s94
      %s96 = sphi 0, %s94
      %s97 = sphi 0, %s96
      %s111 = sphi 0, %s97
      %s119 = sphi 0, %s121
      %s122 = sphi 0, %s119
      %s123 = sphi 0, %s122
      %s139 = sphi 0, %s123
      %s145 = sphi 0, %s147
      %s148 = sphi 0, %s145
      %s149 = sphi 0, %s148
      %s165 = sphi 0, %s149
      %s171 = sphi 0, %s173
      %s174 = sphi 0, %s171
      %s175 = sphi 0, %s174
      %s191 = sphi 0, %s175
      %s199 = sphi 0, %s201
      %s202 = sphi 0, %s199
      %s203 = sphi 0, %s202
      %s219 = sphi 0, %s203
    $region4: #{sscbn_forward.4} parent=1 // loop_header_branch
      %28 = sbr.rel (%p26) target = $region8
    $region5: #{sscbn_forward.4} parent=1 // loop_body
      %s30 = ssub.s32 %s25, 1
      %s31 = ssub.s32 %s25, 2
      %s38 = sadd.s32 1, %s33
      %p39 = scmp.ge.s32.totalorder %s38, 1
      %s40 = scalar_select %p39, 0, %s38
      %s41 = sadd.s32 1, %s32
      %s42 = scalar_select %p39, %s41, %s32
      %p43 = scmp.ge.s32.totalorder %s42, 2
      %s44 = scalar_select %p43, 0, %s42
      %s45 = ssub.s32 %s32, %s44
      %s46 = ssub.s32 %s33, %s40
      %s47 = sor.u32 %s45, %s46
      %p48 = scmp.eq.s32.totalorder %s47, 0
      %s50 = sadd.s32 %s49, 1
      %s51 = scalar_select %p48, %s49, %s50
      %p54 = pneg %p48
      %p55 = scmp.eq.s32.totalorder %s25, 1
      %p56 = por %p54, %p55
      %p57 = scmp.ne.s32.totalorder %s49, %s52
      %p58 = scmp.eq.s32.totalorder %s25, 0
      %p59 = por %p57, %p58
      %p60 = scmp.ne.s32.totalorder %s49, %s52
      %p61 = scmp.eq.s32.totalorder %s30, 1
      %p62 = por %p60, %p61
      %p63 = scmp.ne.s32.totalorder %s52, %s53
      %p64 = scmp.eq.s32.totalorder %s30, 0
      %p65 = por %p63, %p64
      %p66 = scmp.ne.s32.totalorder %s52, %s53
      %p67 = scmp.eq.s32.totalorder %s31, 1
      %p68 = por %p66, %p67
      %p70 = scmp.ne.s32.totalorder %s53, %s69
      %p71 = scmp.eq.s32.totalorder %s31, 0
      %p72 = por %p70, %p71
      %s74 = sadd.s32 %s73, 1
      %p77 = scmp.eq.s32.totalorder %s25, 1
      %p78 = scmp.ne.s32.totalorder %s73, %s75
      %p79 = scmp.eq.s32.totalorder %s25, 0
      %p80 = por %p78, %p79
      %p81 = scmp.ne.s32.totalorder %s73, %s75
      %p82 = scmp.eq.s32.totalorder %s30, 1
      %p83 = por %p81, %p82
      %p84 = scmp.ne.s32.totalorder %s75, %s76
      %p85 = scmp.eq.s32.totalorder %s30, 0
      %p86 = por %p84, %p85
      %p87 = scmp.ne.s32.totalorder %s75, %s76
      %p88 = scmp.eq.s32.totalorder %s31, 1
      %p89 = por %p87, %p88
      %p91 = scmp.ne.s32.totalorder %s76, %s90
      %p92 = scmp.eq.s32.totalorder %s31, 0
      %p93 = por %p91, %p92
      %s95 = sadd.s32 %s94, 1
      %p98 = scmp.eq.s32.totalorder %s25, 1
      %p99 = scmp.ne.s32.totalorder %s94, %s96
      %p100 = scmp.eq.s32.totalorder %s25, 0
      %p101 = por %p99, %p100
      %p102 = scmp.ne.s32.totalorder %s94, %s96
      %p103 = scmp.eq.s32.totalorder %s30, 1
      %p104 = por %p102, %p103
      %p105 = scmp.ne.s32.totalorder %s96, %s97
      %p106 = scmp.eq.s32.totalorder %s30, 0
      %p107 = por %p105, %p106
      %p108 = scmp.ne.s32.totalorder %s96, %s97
      %p109 = scmp.eq.s32.totalorder %s31, 1
      %p110 = por %p108, %p109
      %p112 = scmp.ne.s32.totalorder %s97, %s111
      %p113 = scmp.eq.s32.totalorder %s31, 0
      %p114 = por %p112, %p113
      %s115 = ssub.s32 %s32, %s44
      %s116 = ssub.s32 %s33, %s40
      %s117 = sor.u32 %s115, %s116
      %p118 = scmp.eq.s32.totalorder %s117, 0
      %s120 = sadd.s32 %s119, 1
      %s121 = scalar_select %p118, %s119, %s120
      %p124 = pneg %p118
      %p125 = scmp.eq.s32.totalorder %s25, 1
      %p126 = por %p124, %p125
      %p127 = scmp.ne.s32.totalorder %s119, %s122
      %p128 = scmp.eq.s32.totalorder %s25, 0
      %p129 = por %p127, %p128
      %p130 = scmp.ne.s32.totalorder %s119, %s122
      %p131 = scmp.eq.s32.totalorder %s30, 1
      %p132 = por %p130, %p131
      %p133 = scmp.ne.s32.totalorder %s122, %s123
      %p134 = scmp.eq.s32.totalorder %s30, 0
      %p135 = por %p133, %p134
      %p136 = scmp.ne.s32.totalorder %s122, %s123
      %p137 = scmp.eq.s32.totalorder %s31, 1
      %p138 = por %p136, %p137
      %p140 = scmp.ne.s32.totalorder %s123, %s139
      %p141 = scmp.eq.s32.totalorder %s31, 0
      %p142 = por %p140, %p141
      %s143 = ssub.s32 %s32, %s44
      %p144 = scmp.eq.s32.totalorder %s143, 0
      %s146 = sadd.s32 %s145, 1
      %s147 = scalar_select %p144, %s145, %s146
      %p150 = pneg %p144
      %p151 = scmp.eq.s32.totalorder %s25, 1
      %p152 = por %p150, %p151
      %p153 = scmp.ne.s32.totalorder %s145, %s148
      %p154 = scmp.eq.s32.totalorder %s25, 0
      %p155 = por %p153, %p154
      %p156 = scmp.ne.s32.totalorder %s145, %s148
      %p157 = scmp.eq.s32.totalorder %s30, 1
      %p158 = por %p156, %p157
      %p159 = scmp.ne.s32.totalorder %s148, %s149
      %p160 = scmp.eq.s32.totalorder %s30, 0
      %p161 = por %p159, %p160
      %p162 = scmp.ne.s32.totalorder %s148, %s149
      %p163 = scmp.eq.s32.totalorder %s31, 1
      %p164 = por %p162, %p163
      %p166 = scmp.ne.s32.totalorder %s149, %s165
      %p167 = scmp.eq.s32.totalorder %s31, 0
      %p168 = por %p166, %p167
      %s169 = ssub.s32 %s32, %s44
      %p170 = scmp.eq.s32.totalorder %s169, 0
      %s172 = sadd.s32 %s171, 1
      %s173 = scalar_select %p170, %s171, %s172
      %p176 = pneg %p170
      %p177 = scmp.eq.s32.totalorder %s25, 1
      %p178 = por %p176, %p177
      %p179 = scmp.ne.s32.totalorder %s171, %s174
      %p180 = scmp.eq.s32.totalorder %s25, 0
      %p181 = por %p179, %p180
      %p182 = scmp.ne.s32.totalorder %s171, %s174
      %p183 = scmp.eq.s32.totalorder %s30, 1
      %p184 = por %p182, %p183
      %p185 = scmp.ne.s32.totalorder %s174, %s175
      %p186 = scmp.eq.s32.totalorder %s30, 0
      %p187 = por %p185, %p186
      %p188 = scmp.ne.s32.totalorder %s174, %s175
      %p189 = scmp.eq.s32.totalorder %s31, 1
      %p190 = por %p188, %p189
      %p192 = scmp.ne.s32.totalorder %s175, %s191
      %p193 = scmp.eq.s32.totalorder %s31, 0
      %p194 = por %p192, %p193
      %s195 = ssub.s32 %s32, %s44
      %s196 = ssub.s32 %s33, %s40
      %s197 = sor.u32 %s195, %s196
      %p198 = scmp.eq.s32.totalorder %s197, 0
      %s200 = sadd.s32 %s199, 1
      %s201 = scalar_select %p198, %s199, %s200
      %p204 = pneg %p198
      %p205 = scmp.eq.s32.totalorder %s25, 1
      %p206 = por %p204, %p205
      %p207 = scmp.ne.s32.totalorder %s199, %s202
      %p208 = scmp.eq.s32.totalorder %s25, 0
      %p209 = por %p207, %p208
      %p210 = scmp.ne.s32.totalorder %s199, %s202
      %p211 = scmp.eq.s32.totalorder %s30, 1
      %p212 = por %p210, %p211
      %p213 = scmp.ne.s32.totalorder %s202, %s203
      %p214 = scmp.eq.s32.totalorder %s30, 0
      %p215 = por %p213, %p214
      %p216 = scmp.ne.s32.totalorder %s202, %s203
      %p217 = scmp.eq.s32.totalorder %s31, 1
      %p218 = por %p216, %p217
      %p220 = scmp.ne.s32.totalorder %s203, %s219
      %p221 = scmp.eq.s32.totalorder %s31, 0
      %p222 = por %p220, %p221
      %p223 = scmp.le.s32.totalorder 1, %s25
      %p224 = scmp.lt.s32.totalorder %s25, 3
      %p225 = pnand %p223, %p224
      %p226 = pneg %p225
      // Predicated region
      $region9: #{sscbn_forward.4} parent=5 // pred_check
        _
      $region10: #{sscbn_forward.4} parent=5 // pred_check_branch
        %228 = sbr.rel (%p225) target = $region12
      $region11: #{sscbn_forward.4} parent=5 // pred_region
        %s229 = ssub.s32 %s25, 1
        // Predicated region
        $region13: #{sscbn_forward.4} parent=11 // pred_check
          %p230 = pneg %p86
        $region14: #{sscbn_forward.4} parent=11 // pred_check_branch
          %232 = sbr.rel (%p230) target = $region16
        $region15: #{sscbn_forward.4} parent=11 // pred_region
          %s234 = ssub.s32 512, 512
          %235 = vsyncadd [#allocation6], %s234
          %s236 = sshll.u32 [#allocation5], 4
          %s237 = int_to_ptr.vmem [resolvable:$true] %s236
          %242 = dma.hbm_to_vmem [thread:$0]  %s1, 512, %s237, [#allocation6], 128, 128, 8
        $region16: #{sscbn_forward.4} parent=11 // pred_fallthru
          _
        // Predicated region
        $region17: #{sscbn_forward.4} parent=11 // pred_check
          %p243 = pneg %p107
        $region18: #{sscbn_forward.4} parent=11 // pred_check_branch
          %245 = sbr.rel (%p243) target = $region20
        $region19: #{sscbn_forward.4} parent=11 // pred_region
          %s247 = ssub.s32 512, 512
          %248 = vsyncadd [#allocation6], %s247
          %s249 = sshll.u32 [#allocation7], 4
          %s250 = int_to_ptr.vmem [resolvable:$true] %s249
          %255 = dma.hbm_to_vmem [thread:$0]  %s2, 512, %s250, [#allocation6], 128, 128, 8
        $region20: #{sscbn_forward.4} parent=11 // pred_fallthru
          _
      $region12: #{sscbn_forward.4} parent=5 // pred_fallthru
        _
      %p256 = scmp.lt.s32.totalorder %s25, 2
      // Predicated region
      $region21: #{sscbn_forward.4} parent=5 // pred_check
        %p257 = pneg %p256
      $region22: #{sscbn_forward.4} parent=5 // pred_check_branch
        %259 = sbr.rel (%p257) target = $region24
      $region23: #{sscbn_forward.4} parent=5 // pred_region
        // Predicated region
        $region25: #{sscbn_forward.4} parent=23 // pred_check
          %p260 = pneg %p59
        $region26: #{sscbn_forward.4} parent=23 // pred_check_branch
          %262 = sbr.rel (%p260) target = $region28
        $region27: #{sscbn_forward.4} parent=23 // pred_region
          %s263 = sand.u32 %s49, 1
          %s264 = scalar_lea.sflag [#allocation3], %s263
          %s265 = sand.u32 %s49, 1
          %s266 = smul.addr %s265, 64
          %s267 = scalar_lea.vmem [#allocation2], %s266
          %s268 = smul.u32 2, %s33
          %s270 = ssub.s32 1024, 1024
          %271 = vsyncadd %s264, %s270
          %s272 = smul.addr %s32, 8
          %s273 = sadd.s32 %s268, %s272
          %s274 = smul.addr %s273, 128
          %s275 = scalar_lea.hbm %s0, %s274
          %s276 = sshll.u32 %s267, 4
          %s277 = int_to_ptr.vmem [resolvable:$true] %s276
          %282 = dma.hbm_to_vmem [thread:$0]  %s275, 1024, %s277, %s264, 256, 256, 16
        $region28: #{sscbn_forward.4} parent=23 // pred_fallthru
          _
        // Predicated region
        $region29: #{sscbn_forward.4} parent=23 // pred_check
          %p283 = pneg %p129
        $region30: #{sscbn_forward.4} parent=23 // pred_check_branch
          %285 = sbr.rel (%p283) target = $region32
        $region31: #{sscbn_forward.4} parent=23 // pred_region
          %s286 = sand.u32 %s25, 1
          %s287 = scalar_lea.sflag [#allocation9], %s286
          %s288 = sand.u32 %s119, 1
          %s289 = smul.addr %s288, 2
          %s290 = scalar_lea.vmem [#allocation8], %s289
          %s291 = smul.u32 2, %s33
          %s293 = ssub.s32 32, 32
          %294 = vsyncadd %s287, %s293
          %s295 = smul.addr %s32, 2
          %s296 = sadd.s32 %s291, %s295
          %s297 = smul.addr %s296, 16
          %s298 = scalar_lea.hbm %s3, %s297
          %s300 = sshll.u32 %s290, 4
          %s301 = int_to_ptr.vmem [resolvable:$true] %s300
          %303 = dma.hbm_to_vmem [thread:$0]  %s298, 32, %s301, %s287
        $region32: #{sscbn_forward.4} parent=23 // pred_fallthru
          _
        // Predicated region
        $region33: #{sscbn_forward.4} parent=23 // pred_check
          %p304 = pneg %p155
        $region34: #{sscbn_forward.4} parent=23 // pred_check_branch
          %306 = sbr.rel (%p304) target = $region36
        $region35: #{sscbn_forward.4} parent=23 // pred_region
          %s307 = sand.u32 %s25, 1
          %s308 = scalar_lea.sflag [#allocation9], %s307
          %s309 = sand.u32 %s145, 1
          %s310 = smul.addr %s309, 32
          %s311 = scalar_lea.vmem [#allocation10], %s310
          %s313 = ssub.s32 512, 512
          %314 = vsyncadd %s308, %s313
          %s315 = smul.addr %s32, 4
          %s316 = smul.addr %s315, 128
          %s317 = scalar_lea.hbm %s4, %s316
          %s318 = sshll.u32 %s311, 4
          %s319 = int_to_ptr.vmem [resolvable:$true] %s318
          %324 = dma.hbm_to_vmem [thread:$0]  %s317, 512, %s319, %s308, 128, 128, 8
        $region36: #{sscbn_forward.4} parent=23 // pred_fallthru
          _
        // Predicated region
        $region37: #{sscbn_forward.4} parent=23 // pred_check
          %p325 = pneg %p181
        $region38: #{sscbn_forward.4} parent=23 // pred_check_branch
          %327 = sbr.rel (%p325) target = $region40
        $region39: #{sscbn_forward.4} parent=23 // pred_region
          %s328 = sand.u32 %s171, 1
          %s329 = scalar_lea.sflag [#allocation12], %s328
          %s330 = sand.u32 %s171, 1
          %s331 = smul.addr %s330, 32
          %s332 = scalar_lea.vmem [#allocation11], %s331
          %s334 = ssub.s32 512, 512
          %335 = vsyncadd %s329, %s334
          %s336 = smul.addr %s32, 4
          %s337 = smul.addr %s336, 128
          %s338 = scalar_lea.hbm %s5, %s337
          %s339 = sshll.u32 %s332, 4
          %s340 = int_to_ptr.vmem [resolvable:$true] %s339
          %345 = dma.hbm_to_vmem [thread:$0]  %s338, 512, %s340, %s329, 128, 128, 8
        $region40: #{sscbn_forward.4} parent=23 // pred_fallthru
          _
      $region24: #{sscbn_forward.4} parent=5 // pred_fallthru
        _
      %p346 = scmp.le.s32.totalorder 1, %s25
      %p347 = scmp.lt.s32.totalorder %s25, 3
      %p348 = pnand %p346, %p347
      %p349 = pneg %p348
      // Predicated region
      $region41: #{sscbn_forward.4} parent=5 // pred_check
        _
      $region42: #{sscbn_forward.4} parent=5 // pred_check_branch
        %351 = sbr.rel (%p348) target = $region44
      $region43: #{sscbn_forward.4} parent=5 // pred_region
        %s352 = ssub.s32 %s25, 1
        %s353 = sand.u32 %s52, 1
        %s354 = scalar_lea.sflag [#allocation3], %s353
        %s355 = sand.u32 %s52, 1
        %s356 = smul.addr %s355, 64
        %s357 = scalar_lea.vmem [#allocation2], %s356
        // Predicated region
        $region45: #{sscbn_forward.4} parent=43 // pred_check
          %p358 = pneg %p65
        $region46: #{sscbn_forward.4} parent=43 // pred_check_branch
          %360 = sbr.rel (%p358) target = $region48
        $region47: #{sscbn_forward.4} parent=43 // pred_region
          %361 = dma.done %s354, 1024
        $region48: #{sscbn_forward.4} parent=43 // pred_fallthru
          _
        // Predicated region
        $region49: #{sscbn_forward.4} parent=43 // pred_check
          %p362 = pneg %p86
        $region50: #{sscbn_forward.4} parent=43 // pred_check_branch
          %364 = sbr.rel (%p362) target = $region52
        $region51: #{sscbn_forward.4} parent=43 // pred_region
          %365 = dma.done [#allocation6], 512
        $region52: #{sscbn_forward.4} parent=43 // pred_fallthru
          _
        // Predicated region
        $region53: #{sscbn_forward.4} parent=43 // pred_check
          %p366 = pneg %p107
        $region54: #{sscbn_forward.4} parent=43 // pred_check_branch
          %368 = sbr.rel (%p366) target = $region56
        $region55: #{sscbn_forward.4} parent=43 // pred_region
          %369 = dma.done [#allocation6], 512
        $region56: #{sscbn_forward.4} parent=43 // pred_fallthru
          _
        %s370 = sand.u32 %s30, 1
        %s371 = scalar_lea.sflag [#allocation9], %s370
        %s372 = sand.u32 %s122, 1
        %s373 = smul.addr %s372, 2
        %s374 = scalar_lea.vmem [#allocation8], %s373
        // Predicated region
        $region57: #{sscbn_forward.4} parent=43 // pred_check
          %p375 = pneg %p135
        $region58: #{sscbn_forward.4} parent=43 // pred_check_branch
          %377 = sbr.rel (%p375) target = $region60
        $region59: #{sscbn_forward.4} parent=43 // pred_region
          %378 = dma.done %s371, 32
        $region60: #{sscbn_forward.4} parent=43 // pred_fallthru
          _
        %s379 = sand.u32 %s30, 1
        %s380 = scalar_lea.sflag [#allocation9], %s379
        %s381 = sand.u32 %s148, 1
        %s382 = smul.addr %s381, 32
        %s383 = scalar_lea.vmem [#allocation10], %s382
        // Predicated region
        $region61: #{sscbn_forward.4} parent=43 // pred_check
          %p384 = pneg %p161
        $region62: #{sscbn_forward.4} parent=43 // pred_check_branch
          %386 = sbr.rel (%p384) target = $region64
        $region63: #{sscbn_forward.4} parent=43 // pred_region
          %387 = dma.done %s380, 512
        $region64: #{sscbn_forward.4} parent=43 // pred_fallthru
          _
        %s388 = sand.u32 %s174, 1
        %s389 = scalar_lea.sflag [#allocation12], %s388
        %s390 = sand.u32 %s174, 1
        %s391 = smul.addr %s390, 32
        %s392 = scalar_lea.vmem [#allocation11], %s391
        // Predicated region
        $region65: #{sscbn_forward.4} parent=43 // pred_check
          %p393 = pneg %p187
        $region66: #{sscbn_forward.4} parent=43 // pred_check_branch
          %395 = sbr.rel (%p393) target = $region68
        $region67: #{sscbn_forward.4} parent=43 // pred_region
          %396 = dma.done %s389, 512
        $region68: #{sscbn_forward.4} parent=43 // pred_fallthru
          _
        %s397 = sand.u32 %s52, 1
        %s398 = scalar_lea.sflag [#allocation3], %s397
        %s399 = sand.u32 %s52, 1
        %s400 = smul.addr %s399, 64
        %s401 = scalar_lea.vmem [#allocation2], %s400
        %p402 = pneg %p65
        %p403 = pneg %p62
        %p404 = pneg %p86
        %p405 = pneg %p83
        %p406 = pneg %p107
        %p407 = pneg %p104
        %s408 = sand.u32 %s30, 1
        %s409 = scalar_lea.sflag [#allocation9], %s408
        %s410 = sand.u32 %s122, 1
        %s411 = smul.addr %s410, 2
        %s412 = scalar_lea.vmem [#allocation8], %s411
        %p413 = pneg %p135
        %p414 = pneg %p132
        %s415 = sand.u32 %s30, 1
        %s416 = scalar_lea.sflag [#allocation9], %s415
        %s417 = sand.u32 %s148, 1
        %s418 = smul.addr %s417, 32
        %s419 = scalar_lea.vmem [#allocation10], %s418
        %p420 = pneg %p161
        %p421 = pneg %p158
        %s422 = sand.u32 %s174, 1
        %s423 = scalar_lea.sflag [#allocation12], %s422
        %s424 = sand.u32 %s174, 1
        %s425 = smul.addr %s424, 32
        %s426 = scalar_lea.vmem [#allocation11], %s425
        %p427 = pneg %p187
        %p428 = pneg %p184
        %p429 = pneg %p215
        %p430 = pneg %p212
        %s431 = sand.u32 %s202, 1
        %s432 = scalar_lea.sflag [#allocation4], %s431
        %s433 = sand.u32 %s202, 1
        %s434 = smul.addr %s433, 32
        %s435 = scalar_lea.vmem [#allocation13], %s434
        %s436 = smul.u32 2, %s35
        %s437 = smul.u32 2, %s35
        %s438 = smul.u32 2, %s35
        %v439 = vld [vmem:[%s357] sm:$0xff]
        %v440 = vld [vmem:[%s357 + $0x8] sm:$0xff]
        %v441 = vld [vmem:[%s357 + $0x10] sm:$0xff]
        %v442 = vld [vmem:[%s357 + $0x18] sm:$0xff]
        %v443 = vld [vmem:[%s357 + $0x20] sm:$0xff]
        %v444 = vld [vmem:[%s357 + $0x28] sm:$0xff]
        %v445 = vld [vmem:[%s357 + $0x30] sm:$0xff]
        %v446 = vld [vmem:[%s357 + $0x38] sm:$0xff]
        %v447 = vld [vmem:[#allocation5] sm:$0xff]
        %v448 = vld [vmem:[#allocation5 + $0x8] sm:$0xff]
        %v449 = vld [vmem:[#allocation5 + $0x10] sm:$0xff]
        %v450 = vld [vmem:[#allocation5 + $0x18] sm:$0xff]
        %452 = vset.pattern.permute.xlu0 0
        %453 = vperm.xlu0 %452, %v447
        %v454 = vpop.permute.xlu0 %453
        %457 = vset.pattern.permute.xlu0 0
        %458 = vperm.xlu0 %457, %v448
        %v459 = vpop.permute.xlu0 %458
        %462 = vset.pattern.permute.xlu0 0
        %463 = vperm.xlu0 %462, %v449
        %v464 = vpop.permute.xlu0 %463
        %467 = vset.pattern.permute.xlu0 0
        %468 = vperm.xlu0 %467, %v450
        %v469 = vpop.permute.xlu0 %468
        %v471 = vsub.f32 %v439, %v454
        %v472 = vsub.f32 %v440, %v454
        %v473 = vsub.f32 %v441, %v459
        %v474 = vsub.f32 %v442, %v459
        %v475 = vsub.f32 %v443, %v464
        %v476 = vsub.f32 %v444, %v464
        %v477 = vsub.f32 %v445, %v469
        %v478 = vsub.f32 %v446, %v469
        %v479 = vld [vmem:[#allocation7] sm:$0xff]
        %v480 = vld [vmem:[#allocation7 + $0x8] sm:$0xff]
        %v481 = vld [vmem:[#allocation7 + $0x10] sm:$0xff]
        %v482 = vld [vmem:[#allocation7 + $0x18] sm:$0xff]
        %484 = vset.pattern.permute.xlu0 0
        %485 = vperm.xlu0 %484, %v479
        %v486 = vpop.permute.xlu0 %485
        %489 = vset.pattern.permute.xlu0 0
        %490 = vperm.xlu0 %489, %v480
        %v491 = vpop.permute.xlu0 %490
        %494 = vset.pattern.permute.xlu0 0
        %495 = vperm.xlu0 %494, %v481
        %v496 = vpop.permute.xlu0 %495
        %499 = vset.pattern.permute.xlu0 0
        %500 = vperm.xlu0 %499, %v482
        %v501 = vpop.permute.xlu0 %500
        %v503 = vmul.f32 %v471, %v486
        %v504 = vmul.f32 %v472, %v486
        %v505 = vmul.f32 %v473, %v491
        %v506 = vmul.f32 %v474, %v491
        %v507 = vmul.f32 %v475, %v496
        %v508 = vmul.f32 %v476, %v496
        %v509 = vmul.f32 %v477, %v501
        %v510 = vmul.f32 %v478, %v501
        %v511 = vld [vmem:[%s374] sm:$0x3]
        %v512 = vld [vmem:[%s383] sm:$0xff]
        %v513 = vld [vmem:[%s383 + $0x8] sm:$0xff]
        %v514 = vld [vmem:[%s383 + $0x10] sm:$0xff]
        %v515 = vld [vmem:[%s383 + $0x18] sm:$0xff]
        %v516 = vld [vmem:[%s392] sm:$0xff]
        %v517 = vld [vmem:[%s392 + $0x8] sm:$0xff]
        %v518 = vld [vmem:[%s392 + $0x10] sm:$0xff]
        %v519 = vld [vmem:[%s392 + $0x18] sm:$0xff]
        %521 = vset.pattern.permute.xlu0 0
        %522 = vperm.xlu0 %521, %v512
        %v523 = vpop.permute.xlu0 %522
        %526 = vset.pattern.permute.xlu0 0
        %527 = vperm.xlu0 %526, %v513
        %v528 = vpop.permute.xlu0 %527
        %531 = vset.pattern.permute.xlu0 0
        %532 = vperm.xlu0 %531, %v514
        %v533 = vpop.permute.xlu0 %532
        %536 = vset.pattern.permute.xlu0 0
        %537 = vperm.xlu0 %536, %v515
        %v538 = vpop.permute.xlu0 %537
        %v541 = vlaneseq
        %v542 = vshrl.u32 %v541, 7
        %v543 = vsub.s32 0, %v542
        %v544 = vrot.slane %v511, %v543
        %v545 = vlaneseq
        %v546 = vshrl.u32 %v545, 7
        %v547 = vsub.s32 1, %v546
        %v548 = vrot.slane %v511, %v547
        %v551 = vmul.f32 %v523, %v544
        %v552 = vmul.f32 %v523, %v548
        %v553 = vmul.f32 %v528, %v544
        %v554 = vmul.f32 %v528, %v548
        %v555 = vmul.f32 %v533, %v544
        %v556 = vmul.f32 %v533, %v548
        %v557 = vmul.f32 %v538, %v544
        %v558 = vmul.f32 %v538, %v548
        %v559 = vmul.f32 %v551, %v503
        %v560 = vmul.f32 %v552, %v504
        %v561 = vmul.f32 %v553, %v505
        %v562 = vmul.f32 %v554, %v506
        %v563 = vmul.f32 %v555, %v507
        %v564 = vmul.f32 %v556, %v508
        %v565 = vmul.f32 %v557, %v509
        %v566 = vmul.f32 %v558, %v510
        %568 = vset.pattern.permute.xlu0 0
        %569 = vperm.xlu0 %568, %v516
        %v570 = vpop.permute.xlu0 %569
        %573 = vset.pattern.permute.xlu0 0
        %574 = vperm.xlu0 %573, %v517
        %v575 = vpop.permute.xlu0 %574
        %578 = vset.pattern.permute.xlu0 0
        %579 = vperm.xlu0 %578, %v518
        %v580 = vpop.permute.xlu0 %579
        %583 = vset.pattern.permute.xlu0 0
        %584 = vperm.xlu0 %583, %v519
        %v585 = vpop.permute.xlu0 %584
        %v587 = vmul.f32 %v570, %v544
        %v588 = vmul.f32 %v570, %v548
        %v589 = vmul.f32 %v575, %v544
        %v590 = vmul.f32 %v575, %v548
        %v591 = vmul.f32 %v580, %v544
        %v592 = vmul.f32 %v580, %v548
        %v593 = vmul.f32 %v585, %v544
        %v594 = vmul.f32 %v585, %v548
        %v595 = vadd.f32 %v559, %v587
        %v596 = vadd.f32 %v560, %v588
        %v597 = vadd.f32 %v561, %v589
        %v598 = vadd.f32 %v562, %v590
        %v599 = vadd.f32 %v563, %v591
        %v600 = vadd.f32 %v564, %v592
        %v601 = vadd.f32 %v565, %v593
        %v602 = vadd.f32 %v566, %v594
        %v603 = vadd.f32 %v503, %v595
        %v604 = vadd.f32 %v504, %v596
        %v605 = vadd.f32 %v505, %v597
        %v606 = vadd.f32 %v506, %v598
        %v607 = vadd.f32 %v507, %v599
        %v608 = vadd.f32 %v508, %v600
        %v609 = vadd.f32 %v509, %v601
        %v610 = vadd.f32 %v510, %v602
        %v611 = vmax.f32 %v603, 0.0
        %v612 = vmax.f32 %v604, 0.0
        %v613 = vmax.f32 %v605, 0.0
        %v614 = vmax.f32 %v606, 0.0
        %v615 = vmax.f32 %v607, 0.0
        %v616 = vmax.f32 %v608, 0.0
        %v617 = vmax.f32 %v609, 0.0
        %v618 = vmax.f32 %v610, 0.0
        %v619 = vpack.c.bf16 %v613, %v611
        %v620 = vpack.c.bf16 %v614, %v612
        %v621 = vpack.c.bf16 %v617, %v615
        %v622 = vpack.c.bf16 %v618, %v616
        %v627 = vunpack.c.l.b16 %v619
        %v628 = vunpack.c.l.b16 %v620
        %v629 = vunpack.c.h.b16 %v619
        %v630 = vunpack.c.h.b16 %v620
        %v631 = vunpack.c.l.b16 %v621
        %v632 = vunpack.c.l.b16 %v622
        %v633 = vunpack.c.h.b16 %v621
        %v634 = vunpack.c.h.b16 %v622
        %v635 = vpack.c.b16 %v628, %v627
        %v636 = vpack.c.b16 %v630, %v629
        %v637 = vpack.c.b16 %v632, %v631
        %v638 = vpack.c.b16 %v634, %v633
        %643 = vst [vmem:[%s435] sm:$0xff] %v635
        %644 = vst [vmem:[%s435 + $0x8] sm:$0xff] %v636
        %645 = vst [vmem:[%s435 + $0x10] sm:$0xff] %v637
        %646 = vst [vmem:[%s435 + $0x18] sm:$0xff] %v638
        %s647 = sand.u32 %s202, 1
        %s648 = scalar_lea.sflag [#allocation4], %s647
        %s649 = sand.u32 %s202, 1
        %s650 = smul.addr %s649, 32
        %s651 = scalar_lea.vmem [#allocation13], %s650
        // Predicated region
        $region69: #{sscbn_forward.4} parent=43 // pred_check
          %p652 = pneg %p212
        $region70: #{sscbn_forward.4} parent=43 // pred_check_branch
          %654 = sbr.rel (%p652) target = $region72
        $region71: #{sscbn_forward.4} parent=43 // pred_region
          %s655 = smul.u32 2, %s35
          %s657 = ssub.s32 512, 512
          %658 = vsyncadd %s648, %s657
          %s659 = smul.addr %s34, 8
          %s660 = sadd.s32 %s655, %s659
          %s661 = smul.addr %s660, 64
          %s662 = scalar_lea.hbm %s6, %s661
          %s663 = sshll.u32 %s651, 4
          %s664 = int_to_ptr.vmem [resolvable:$true] %s663
          %669 = dma.vmem_to_hbm [thread:$0]  %s664, 512, %s662, %s648, 128, 128, 8
        $region72: #{sscbn_forward.4} parent=43 // pred_fallthru
          _
      $region44: #{sscbn_forward.4} parent=5 // pred_fallthru
        _
      %p670 = scmp.le.s32.totalorder 2, %s25
      // Predicated region
      $region73: #{sscbn_forward.4} parent=5 // pred_check
        %p671 = pneg %p670
      $region74: #{sscbn_forward.4} parent=5 // pred_check_branch
        %673 = sbr.rel (%p671) target = $region76
      $region75: #{sscbn_forward.4} parent=5 // pred_region
        %s674 = ssub.s32 %s25, 2
        // Predicated region
        $region77: #{sscbn_forward.4} parent=75 // pred_check
          %p675 = pneg %p218
        $region78: #{sscbn_forward.4} parent=75 // pred_check_branch
          %677 = sbr.rel (%p675) target = $region80
        $region79: #{sscbn_forward.4} parent=75 // pred_region
          %s678 = sand.u32 %s203, 1
          %s679 = scalar_lea.sflag [#allocation4], %s678
          %s680 = sand.u32 %s203, 1
          %s681 = smul.addr %s680, 32
          %s682 = scalar_lea.vmem [#allocation13], %s681
          %683 = dma.done %s679, 512
        $region80: #{sscbn_forward.4} parent=75 // pred_fallthru
          _
      $region76: #{sscbn_forward.4} parent=5 // pred_fallthru
        _
    $region6: #{sscbn_forward.4} parent=1 // loop_footer
      %s29 = sadd.s32 1, %s25
    $region7: #{sscbn_forward.4} parent=1 // loop_footer_branch
      %24 = sbr.rel target = $region3
    $region8: #{sscbn_forward.4} parent=1 // loop_exit
      _
    %684 = vsyncpa [#allocation3], 1
    %s685 = scalar_lea.sflag [#allocation3], 1
    %686 = vsyncpa %s685, 1
    %687 = vsyncpa [#allocation6], 1
    %688 = vsyncpa [#allocation9], 1
    %s689 = scalar_lea.sflag [#allocation9], 1
    %690 = vsyncpa %s689, 1
    %691 = vsyncpa [#allocation12], 1
    %s692 = scalar_lea.sflag [#allocation12], 1
    %693 = vsyncpa %s692, 1
    %694 = vsyncpa [#allocation4], 1
    %s695 = scalar_lea.sflag [#allocation4], 1
    %696 = vsyncpa %s695, 1

// kernel: sscbn_forward.5
$region0: #{sscbn_forward.5}
  #allocation0 [shape = 'u32[]', space=smem, size = 0x4, offset = 0x4, fixed_abs, tag = 'smem constant byte address 0x4 - core index']
  #allocation1 [shape = 'u32[144,128]{1,0:T(1,128)}', space=vmem, size = 0x12000, scoped, tag = 'internal scratch']
  #allocation2 [shape = 'bf16[32,401]{1,0:T(16,128)(2,1)}', space=vmem, size = 0x8000, scoped, tag = 'scratch operand']
  #allocation3 [shape = 'bf16[288,256]{1,0:T(16,128)(2,1)}', space=vmem, size = 0x24000, scoped, tag = 'scratch operand']
  %s0 = inlined_call_operand.hbm [shape: bf16[2,32,256], index: 0, kind: input, shape index: {}]
  %s1 = inlined_call_operand.hbm [shape: bf16[32,288], index: 1, kind: input, shape index: {}]
  %s2 = inlined_call_operand.hbm [shape: f32[32,1], index: 2, kind: input, shape index: {}]
  %s3 = inlined_call_operand.hbm [shape: f32[2,32,256], index: 3, kind: output, shape index: {}]
  %s4 = sld [smem:[#allocation0]]
  $region57: #{sscbn_forward.5} parent=0
    _
  %s6 = ssub.s32 1, %s4
  %s7 = scalar_select 0, %s6, %s4
  $region1: #{sscbn_forward.5} parent=0
    #allocation4 [shape = 'u8[32768]{0}', space=vmem, size = 0x8000, scoped, tag = 'input window, operand 0']
    #allocation5 [shape = 's32[2]{0}', space=sflag, size = 0x8, scoped, tag = 'scoped memory for sscbn_forward.5']
    #allocation6 [shape = 's32[2]{0}', space=sflag, size = 0x8, scoped, tag = 'scoped memory for sscbn_forward.5']
    #allocation7 [shape = 'u8[24576]{0}', space=vmem, size = 0x6000, scoped, tag = 'input window, operand 1, single buffered']
    #allocation8 [shape = 's32[1]{0}', space=sflag, size = 0x4, scoped, tag = 'scoped memory for sscbn_forward.5']
    #allocation9 [shape = 'u8[16384]{0}', space=vmem, size = 0x4000, scoped, tag = 'input window, operand 2, single buffered']
    #allocation10 [shape = 'u8[65536]{0}', space=vmem, size = 0x10000, scoped, tag = 'output window, operand 0']
    %8 = vsyncpa [#allocation5], 0
    %s9 = scalar_lea.sflag [#allocation5], 1
    %10 = vsyncpa %s9, 0
    %11 = vsyncpa [#allocation8], 0
    %12 = vsyncpa [#allocation6], 0
    %s13 = scalar_lea.sflag [#allocation6], 1
    %14 = vsyncpa %s13, 0
    loop: start=0, step=1, limit=4
    $region2: #{sscbn_forward.5} parent=1 // loop_pre_header
      _
    $region3: #{sscbn_forward.5} parent=1 // loop_header
      %s16 = sphi 0, %s20
      %p17 = scmp.ge.s32.totalorder %s16, 4
      %s23 = sphi 0, %s42
      %s24 = sphi 0, %s38
      %s25 = sphi 0, %s34
      %s26 = sphi 0, %s23
      %s27 = sphi 0, %s24
      %s28 = sphi 0, %s25
      %s29 = sphi 0, %s26
      %s30 = sphi 0, %s27
      %s31 = sphi 0, %s28
      %s47 = sphi 0, %s49
      %s50 = sphi 0, %s47
      %s51 = sphi 0, %s50
      %s67 = sphi 0, %s51
      %s73 = sphi 0, %s75
      %s76 = sphi 0, %s73
      %s77 = sphi 0, %s76
      %s93 = sphi 0, %s77
      %s99 = sphi 0, %s101
      %s102 = sphi 0, %s99
      %s103 = sphi 0, %s102
      %s119 = sphi 0, %s103
      %s129 = sphi 0, %s131
      %s132 = sphi 0, %s129
      %s133 = sphi 0, %s132
      %s149 = sphi 0, %s133
    $region4: #{sscbn_forward.5} parent=1 // loop_header_branch
      %19 = sbr.rel (%p17) target = $region8
    $region5: #{sscbn_forward.5} parent=1 // loop_body
      %s21 = ssub.s32 %s16, 1
      %s22 = ssub.s32 %s16, 2
      %s32 = sadd.s32 1, %s25
      %p33 = scmp.ge.s32.totalorder %s32, 1
      %s34 = scalar_select %p33, 0, %s32
      %s35 = sadd.s32 1, %s24
      %s36 = scalar_select %p33, %s35, %s24
      %p37 = scmp.ge.s32.totalorder %s36, 1
      %s38 = scalar_select %p37, 0, %s36
      %s39 = sadd.s32 1, %s23
      %s40 = scalar_select %p37, %s39, %s23
      %p41 = scmp.ge.s32.totalorder %s40, 2
      %s42 = scalar_select %p41, 0, %s40
      %s43 = ssub.s32 %s23, %s42
      %s44 = ssub.s32 %s25, %s34
      %s45 = sor.u32 %s43, %s44
      %p46 = scmp.eq.s32.totalorder %s45, 0
      %s48 = sadd.s32 %s47, 1
      %s49 = scalar_select %p46, %s47, %s48
      %p52 = pneg %p46
      %p53 = scmp.eq.s32.totalorder %s16, 1
      %p54 = por %p52, %p53
      %p55 = scmp.ne.s32.totalorder %s47, %s50
      %p56 = scmp.eq.s32.totalorder %s16, 0
      %p57 = por %p55, %p56
      %p58 = scmp.ne.s32.totalorder %s47, %s50
      %p59 = scmp.eq.s32.totalorder %s21, 1
      %p60 = por %p58, %p59
      %p61 = scmp.ne.s32.totalorder %s50, %s51
      %p62 = scmp.eq.s32.totalorder %s21, 0
      %p63 = por %p61, %p62
      %p64 = scmp.ne.s32.totalorder %s50, %s51
      %p65 = scmp.eq.s32.totalorder %s22, 1
      %p66 = por %p64, %p65
      %p68 = scmp.ne.s32.totalorder %s51, %s67
      %p69 = scmp.eq.s32.totalorder %s22, 0
      %p70 = por %p68, %p69
      %s71 = ssub.s32 %s24, %s38
      %p72 = scmp.eq.s32.totalorder %s71, 0
      %s74 = sadd.s32 %s73, 1
      %s75 = scalar_select %p72, %s73, %s74
      %p78 = pneg %p72
      %p79 = scmp.eq.s32.totalorder %s16, 1
      %p80 = por %p78, %p79
      %p81 = scmp.ne.s32.totalorder %s73, %s76
      %p82 = scmp.eq.s32.totalorder %s16, 0
      %p83 = por %p81, %p82
      %p84 = scmp.ne.s32.totalorder %s73, %s76
      %p85 = scmp.eq.s32.totalorder %s21, 1
      %p86 = por %p84, %p85
      %p87 = scmp.ne.s32.totalorder %s76, %s77
      %p88 = scmp.eq.s32.totalorder %s21, 0
      %p89 = por %p87, %p88
      %p90 = scmp.ne.s32.totalorder %s76, %s77
      %p91 = scmp.eq.s32.totalorder %s22, 1
      %p92 = por %p90, %p91
      %p94 = scmp.ne.s32.totalorder %s77, %s93
      %p95 = scmp.eq.s32.totalorder %s22, 0
      %p96 = por %p94, %p95
      %s97 = ssub.s32 %s24, %s38
      %p98 = scmp.eq.s32.totalorder %s97, 0
      %s100 = sadd.s32 %s99, 1
      %s101 = scalar_select %p98, %s99, %s100
      %p104 = pneg %p98
      %p105 = scmp.eq.s32.totalorder %s16, 1
      %p106 = por %p104, %p105
      %p107 = scmp.ne.s32.totalorder %s99, %s102
      %p108 = scmp.eq.s32.totalorder %s16, 0
      %p109 = por %p107, %p108
      %p110 = scmp.ne.s32.totalorder %s99, %s102
      %p111 = scmp.eq.s32.totalorder %s21, 1
      %p112 = por %p110, %p111
      %p113 = scmp.ne.s32.totalorder %s102, %s103
      %p114 = scmp.eq.s32.totalorder %s21, 0
      %p115 = por %p113, %p114
      %p116 = scmp.ne.s32.totalorder %s102, %s103
      %p117 = scmp.eq.s32.totalorder %s22, 1
      %p118 = por %p116, %p117
      %p120 = scmp.ne.s32.totalorder %s103, %s119
      %p121 = scmp.eq.s32.totalorder %s22, 0
      %p122 = por %p120, %p121
      %s123 = ssub.s32 %s23, %s42
      %s124 = ssub.s32 %s24, %s38
      %s125 = sor.u32 %s123, %s124
      %s126 = ssub.s32 %s25, %s34
      %s127 = sor.u32 %s125, %s126
      %p128 = scmp.eq.s32.totalorder %s127, 0
      %s130 = sadd.s32 %s129, 1
      %s131 = scalar_select %p128, %s129, %s130
      %p134 = pneg %p128
      %p135 = scmp.eq.s32.totalorder %s16, 1
      %p136 = por %p134, %p135
      %p137 = scmp.ne.s32.totalorder %s129, %s132
      %p138 = scmp.eq.s32.totalorder %s16, 0
      %p139 = por %p137, %p138
      %p140 = scmp.ne.s32.totalorder %s129, %s132
      %p141 = scmp.eq.s32.totalorder %s21, 1
      %p142 = por %p140, %p141
      %p143 = scmp.ne.s32.totalorder %s132, %s133
      %p144 = scmp.eq.s32.totalorder %s21, 0
      %p145 = por %p143, %p144
      %p146 = scmp.ne.s32.totalorder %s132, %s133
      %p147 = scmp.eq.s32.totalorder %s22, 1
      %p148 = por %p146, %p147
      %p150 = scmp.ne.s32.totalorder %s133, %s149
      %p151 = scmp.eq.s32.totalorder %s22, 0
      %p152 = por %p150, %p151
      %p153 = scmp.le.s32.totalorder 1, %s16
      %p154 = scmp.lt.s32.totalorder %s16, 3
      %p155 = pnand %p153, %p154
      %p156 = pneg %p155
      // Predicated region
      $region9: #{sscbn_forward.5} parent=5 // pred_check
        _
      $region10: #{sscbn_forward.5} parent=5 // pred_check_branch
        %158 = sbr.rel (%p155) target = $region12
      $region11: #{sscbn_forward.5} parent=5 // pred_region
        %s159 = ssub.s32 %s16, 1
        // Predicated region
        $region13: #{sscbn_forward.5} parent=11 // pred_check
          %p160 = pneg %p89
        $region14: #{sscbn_forward.5} parent=11 // pred_check_branch
          %162 = sbr.rel (%p160) target = $region16
        $region15: #{sscbn_forward.5} parent=11 // pred_region
          %s163 = smul.u32 4, %s27
          %s165 = ssub.s32 768, 768
          %166 = vsyncadd [#allocation8], %s165
          %s167 = smul.addr %s163, 3
          %s168 = smul.addr %s167, 64
          %s169 = scalar_lea.hbm %s1, %s168
          %s170 = sshll.u32 [#allocation7], 4
          %s171 = int_to_ptr.vmem [resolvable:$true] %s170
          %176 = dma.hbm_to_vmem [thread:$0]  %s169, 768, %s171, [#allocation8], 192, 192, 12
        $region16: #{sscbn_forward.5} parent=11 // pred_fallthru
          _
        // Predicated region
        $region17: #{sscbn_forward.5} parent=11 // pred_check
          %p177 = pneg %p115
        $region18: #{sscbn_forward.5} parent=11 // pred_check_branch
          %179 = sbr.rel (%p177) target = $region20
        $region19: #{sscbn_forward.5} parent=11 // pred_region
          %s180 = smul.u32 4, %s27
          %s182 = ssub.s32 512, 512
          %183 = vsyncadd [#allocation8], %s182
          %s184 = smul.addr %s180, 128
          %s185 = scalar_lea.hbm %s2, %s184
          %s186 = sshll.u32 [#allocation9], 4
          %s187 = int_to_ptr.vmem [resolvable:$true] %s186
          %192 = dma.hbm_to_vmem [thread:$0]  %s185, 512, %s187, [#allocation8], 128, 128, 8
        $region20: #{sscbn_forward.5} parent=11 // pred_fallthru
          _
      $region12: #{sscbn_forward.5} parent=5 // pred_fallthru
        _
      %p193 = scmp.lt.s32.totalorder %s16, 2
      // Predicated region
      $region21: #{sscbn_forward.5} parent=5 // pred_check
        %p194 = pneg %p193
      $region22: #{sscbn_forward.5} parent=5 // pred_check_branch
        %196 = sbr.rel (%p194) target = $region24
      $region23: #{sscbn_forward.5} parent=5 // pred_region
        // Predicated region
        $region25: #{sscbn_forward.5} parent=23 // pred_check
          %p197 = pneg %p57
        $region26: #{sscbn_forward.5} parent=23 // pred_check_branch
          %199 = sbr.rel (%p197) target = $region28
        $region27: #{sscbn_forward.5} parent=23 // pred_region
          %s200 = sand.u32 %s47, 1
          %s201 = scalar_lea.sflag [#allocation5], %s200
          %s202 = sand.u32 %s47, 1
          %s203 = smul.addr %s202, 32
          %s204 = scalar_lea.vmem [#allocation4], %s203
          %s205 = smul.u32 2, %s25
          %s207 = ssub.s32 512, 512
          %208 = vsyncadd %s201, %s207
          %s209 = smul.addr %s23, 8
          %s210 = sadd.s32 %s205, %s209
          %s211 = smul.addr %s210, 64
          %s212 = scalar_lea.hbm %s0, %s211
          %s213 = sshll.u32 %s204, 4
          %s214 = int_to_ptr.vmem [resolvable:$true] %s213
          %219 = dma.hbm_to_vmem [thread:$0]  %s212, 512, %s214, %s201, 128, 128, 8
        $region28: #{sscbn_forward.5} parent=23 // pred_fallthru
          _
      $region24: #{sscbn_forward.5} parent=5 // pred_fallthru
        _
      %p220 = scmp.le.s32.totalorder 1, %s16
      %p221 = scmp.lt.s32.totalorder %s16, 3
      %p222 = pnand %p220, %p221
      %p223 = pneg %p222
      // Predicated region
      $region29: #{sscbn_forward.5} parent=5 // pred_check
        _
      $region30: #{sscbn_forward.5} parent=5 // pred_check_branch
        %225 = sbr.rel (%p222) target = $region32
      $region31: #{sscbn_forward.5} parent=5 // pred_region
        %s226 = ssub.s32 %s16, 1
        %s227 = sand.u32 %s50, 1
        %s228 = scalar_lea.sflag [#allocation5], %s227
        %s229 = sand.u32 %s50, 1
        %s230 = smul.addr %s229, 32
        %s231 = scalar_lea.vmem [#allocation4], %s230
        // Predicated region
        $region33: #{sscbn_forward.5} parent=31 // pred_check
          %p232 = pneg %p63
        $region34: #{sscbn_forward.5} parent=31 // pred_check_branch
          %234 = sbr.rel (%p232) target = $region36
        $region35: #{sscbn_forward.5} parent=31 // pred_region
          %235 = dma.done %s228, 512
        $region36: #{sscbn_forward.5} parent=31 // pred_fallthru
          _
        // Predicated region
        $region37: #{sscbn_forward.5} parent=31 // pred_check
          %p236 = pneg %p89
        $region38: #{sscbn_forward.5} parent=31 // pred_check_branch
          %238 = sbr.rel (%p236) target = $region40
        $region39: #{sscbn_forward.5} parent=31 // pred_region
          %239 = dma.done [#allocation8], 768
        $region40: #{sscbn_forward.5} parent=31 // pred_fallthru
          _
        // Predicated region
        $region41: #{sscbn_forward.5} parent=31 // pred_check
          %p240 = pneg %p115
        $region42: #{sscbn_forward.5} parent=31 // pred_check_branch
          %242 = sbr.rel (%p240) target = $region44
        $region43: #{sscbn_forward.5} parent=31 // pred_region
          %243 = dma.done [#allocation8], 512
        $region44: #{sscbn_forward.5} parent=31 // pred_fallthru
          _
        %s244 = sand.u32 %s50, 1
        %s245 = scalar_lea.sflag [#allocation5], %s244
        %s246 = sand.u32 %s50, 1
        %s247 = smul.addr %s246, 32
        %s248 = scalar_lea.vmem [#allocation4], %s247
        %p249 = pneg %p63
        %p250 = pneg %p60
        %p251 = pneg %p89
        %p252 = pneg %p86
        %p253 = pneg %p115
        %p254 = pneg %p112
        %p255 = pneg %p145
        %p256 = pneg %p142
        %s257 = sand.u32 %s132, 1
        %s258 = scalar_lea.sflag [#allocation6], %s257
        %s259 = sand.u32 %s132, 1
        %s260 = smul.addr %s259, 64
        %s261 = scalar_lea.vmem [#allocation10], %s260
        %s262 = smul.u32 2, %s28
        %s263 = smul.u32 4, %s27
        %s264 = smul.u32 4, %s27
        %s265 = smul.u32 4, %s27
        %s266 = smul.u32 2, %s28
        %270 = vst [vmem:[#allocation2] sm:$0xff] 0
        %271 = vst [vmem:[#allocation2 + $0x20] sm:$0xff] 0
        %vm272 = vcmask 138240
        %273 = vst.msk [vmem:[#allocation2 + $0x18] sm:$0xff] %vm272, 0
        %274 = vst.msk [vmem:[#allocation2 + $0x38] sm:$0xff] %vm272, 0
        %v275 = vld [vmem:[%s231] sm:$0xff]
        %v276 = vld [vmem:[%s231 + $0x8] sm:$0xff]
        %v277 = vld [vmem:[%s231 + $0x10] sm:$0xff]
        %v278 = vld [vmem:[%s231 + $0x18] sm:$0xff]
        %v283 = vunpack.c.l.b16 %v275
        %v284 = vunpack.c.h.b16 %v275
        %v285 = vunpack.c.l.b16 %v276
        %v286 = vunpack.c.h.b16 %v276
        %v287 = vunpack.c.l.b16 %v277
        %v288 = vunpack.c.h.b16 %v277
        %v289 = vunpack.c.l.b16 %v278
        %v290 = vunpack.c.h.b16 %v278
        %v291 = vpack.c.b16 %v285, %v283
        %v292 = vpack.c.b16 %v286, %v284
        %v293 = vpack.c.b16 %v289, %v287
        %v294 = vpack.c.b16 %v290, %v288
        %299 = vst [vmem:[#allocation2 + $0x8] sm:$0xff] %v291
        %300 = vst [vmem:[#allocation2 + $0x10] sm:$0xff] %v292
        %301 = vst [vmem:[#allocation2 + $0x28] sm:$0xff] %v293
        %302 = vst [vmem:[#allocation2 + $0x30] sm:$0xff] %v294
        %v303 = vlaneseq
        %v304 = vand.u32 %v303, 127
        %v305 = vadd.s32 %v304, 128
        %vm306 = vcmp.lt.s32.totalorder %v304, 0
        %v307 = vsub.s32 0, %v304
        %v308 = vsel %vm306, %v307, %v304
        %v309 = vshrl.u32 %v308, 4
        %v310 = vand.u32 %v308, 15
        %v311 = vsub.s32 0, %v310
        %v312 = vsel %vm306, %v311, %v310
        %vm313 = vcmp.lt.s32.totalorder %v305, 0
        %v314 = vsub.s32 0, %v305
        %v315 = vsel %vm313, %v314, %v305
        %v316 = vshrl.u32 %v315, 4
        %v317 = vand.u32 %v315, 15
        %v318 = vsub.s32 0, %v317
        %v319 = vsel %vm313, %v318, %v317
        %vm320 = vcmp.ne.s32.totalorder %v312, 0
        %vm321 = vcmp.ne.s32.totalorder %v319, 0
        %vm322 = vcmp.lt.s32.totalorder %v312, 0
        %vm323 = vcmp.lt.s32.totalorder %v319, 0
        %vm324 = vmand %vm322, %vm320
        %vm325 = vmand %vm323, %vm321
        %v326 = vadd.s32 %v312, 16
        %v327 = vadd.s32 %v319, 16
        %v328 = vsel %vm324, %v326, %v312
        %v329 = vsel %vm325, %v327, %v319
        %vm330 = vcmp.eq.s32.totalorder %v328, 0
        %vm331 = vcmp.eq.s32.totalorder %v329, 0
        %vm332 = vcmp.eq.s32.totalorder %v328, 15
        %vm333 = vcmp.eq.s32.totalorder %v329, 15
        %v334 = vld [vmem:[#allocation2] sm:$0xff]
        %v335 = vld [vmem:[#allocation2 + $0x8] sm:$0xff]
        %v336 = vld [vmem:[#allocation2 + $0x10] sm:$0xff]
        %v337 = vld [vmem:[#allocation2 + $0x20] sm:$0xff]
        %v338 = vld [vmem:[#allocation2 + $0x28] sm:$0xff]
        %v339 = vld [vmem:[#allocation2 + $0x30] sm:$0xff]
        %v340 = vsel %vm330, 1, 0
        %v341 = vsel %vm331, 1, 0
        %vm342 = vcmp.eq.s32.totalorder %v340, 1
        %vm343 = vcmp.eq.s32.totalorder %v341, 1
        %vm344 = vmpackc.low %vm343, %vm342
        %v345 = vsel %vm344, 65537, 0
        %v346 = vlaneseq
        %v347 = vshrl.u32 %v346, 7
        %v348 = vsub.s32 0, %v347
        %v349 = vrot.slane %v345, %v348
        %v350 = vlaneseq
        %v351 = vshrl.u32 %v350, 7
        %v352 = vsub.s32 4, %v351
        %v353 = vrot.slane %v345, %v352
        %354 = vrot.lane.b32.xlu0 %v349, 111
        %v355 = vpop.permute.xlu0 %354
        %356 = vrot.lane.b32.xlu0 %v353, 111
        %v357 = vpop.permute.xlu0 %356
        %vm358 = vcmask 908288
        %v359 = vsel %vm358, %v355, %v357
        %vm360 = vcmp.ne.s16.totalorder %v355, 0
        %vm361 = vcmp.ne.s16.totalorder %v359, 0
        %vm362 = vcmp.ne.s16.totalorder %v357, 0
        %v363 = vsel %vm360, 0, %v334
        %v364 = vsel %vm361, 0, %v335
        %v365 = vsel %vm362, 0, %v336
        %v366 = vsel %vm360, 0, %v337
        %v367 = vsel %vm361, 0, %v338
        %v368 = vsel %vm362, 0, %v339
        %375 = vrot.lane.b32.xlu0 %v363, 17
        %v376 = vpop.permute.xlu0 %375
        %377 = vrot.lane.b32.xlu0 %v364, 17
        %v378 = vpop.permute.xlu0 %377
        %379 = vrot.lane.b32.xlu0 %v365, 17
        %v380 = vpop.permute.xlu0 %379
        %381 = vrot.lane.b32.xlu0 %v366, 17
        %v382 = vpop.permute.xlu0 %381
        %383 = vrot.lane.b32.xlu0 %v367, 17
        %v384 = vpop.permute.xlu0 %383
        %385 = vrot.lane.b32.xlu0 %v368, 17
        %v386 = vpop.permute.xlu0 %385
        %vm387 = vcmask 138240
        %v388 = vsel %vm387, %v376, %v378
        %v389 = vsel %vm387, %v378, %v380
        %v390 = vsel %vm387, %v382, %v384
        %v391 = vsel %vm387, %v384, %v386
        %396 = vst [vmem:[#allocation3] sm:$0xff] %v388
        %397 = vst [vmem:[#allocation3 + $0x8] sm:$0xff] %v389
        %398 = vst [vmem:[#allocation3 + $0x10] sm:$0xff] %v390
        %399 = vst [vmem:[#allocation3 + $0x18] sm:$0xff] %v391
        %v400 = vld [vmem:[#allocation2] sm:$0xff]
        %v401 = vld [vmem:[#allocation2 + $0x8] sm:$0xff]
        %v402 = vld [vmem:[#allocation2 + $0x10] sm:$0xff]
        %v403 = vld [vmem:[#allocation2 + $0x20] sm:$0xff]
        %v404 = vld [vmem:[#allocation2 + $0x28] sm:$0xff]
        %v405 = vld [vmem:[#allocation2 + $0x30] sm:$0xff]
        %412 = vrot.lane.b32.xlu0 %v400, 16
        %v413 = vpop.permute.xlu0 %412
        %414 = vrot.lane.b32.xlu0 %v401, 16
        %v415 = vpop.permute.xlu0 %414
        %416 = vrot.lane.b32.xlu0 %v402, 16
        %v417 = vpop.permute.xlu0 %416
        %418 = vrot.lane.b32.xlu0 %v403, 16
        %v419 = vpop.permute.xlu0 %418
        %420 = vrot.lane.b32.xlu0 %v404, 16
        %v421 = vpop.permute.xlu0 %420
        %422 = vrot.lane.b32.xlu0 %v405, 16
        %v423 = vpop.permute.xlu0 %422
        %vm424 = vcmask 130048
        %v425 = vsel %vm424, %v413, %v415
        %v426 = vsel %vm424, %v415, %v417
        %v427 = vsel %vm424, %v419, %v421
        %v428 = vsel %vm424, %v421, %v423
        %433 = vst [vmem:[#allocation3 + $0x20] sm:$0xff] %v425
        %434 = vst [vmem:[#allocation3 + $0x28] sm:$0xff] %v426
        %435 = vst [vmem:[#allocation3 + $0x30] sm:$0xff] %v427
        %436 = vst [vmem:[#allocation3 + $0x38] sm:$0xff] %v428
        %v437 = vld [vmem:[#allocation2] sm:$0xff]
        %v438 = vld [vmem:[#allocation2 + $0x8] sm:$0xff]
        %v439 = vld [vmem:[#allocation2 + $0x10] sm:$0xff]
        %v440 = vld [vmem:[#allocation2 + $0x20] sm:$0xff]
        %v441 = vld [vmem:[#allocation2 + $0x28] sm:$0xff]
        %v442 = vld [vmem:[#allocation2 + $0x30] sm:$0xff]
        %v443 = vsel %vm332, 1, 0
        %v444 = vsel %vm333, 1, 0
        %vm445 = vcmp.eq.s32.totalorder %v443, 1
        %vm446 = vcmp.eq.s32.totalorder %v444, 1
        %vm447 = vmpackc.low %vm446, %vm445
        %v448 = vsel %vm447, 65537, 0
        %v449 = vlaneseq
        %v450 = vshrl.u32 %v449, 7
        %v451 = vsub.s32 0, %v450
        %v452 = vrot.slane %v448, %v451
        %v453 = vlaneseq
        %v454 = vshrl.u32 %v453, 7
        %v455 = vsub.s32 4, %v454
        %v456 = vrot.slane %v448, %v455
        %457 = vrot.lane.b32.xlu0 %v452, 113
        %v458 = vpop.permute.xlu0 %457
        %459 = vrot.lane.b32.xlu0 %v456, 113
        %v460 = vpop.permute.xlu0 %459
        %vm461 = vcmask 924672
        %v462 = vsel %vm461, %v458, %v460
        %vm463 = vcmp.ne.s16.totalorder %v458, 0
        %vm464 = vcmp.ne.s16.totalorder %v462, 0
        %vm465 = vcmp.ne.s16.totalorder %v460, 0
        %v466 = vsel %vm463, 0, %v437
        %v467 = vsel %vm464, 0, %v438
        %v468 = vsel %vm465, 0, %v439
        %v469 = vsel %vm463, 0, %v440
        %v470 = vsel %vm464, 0, %v441
        %v471 = vsel %vm465, 0, %v442
        %478 = vrot.lane.b32.xlu0 %v466, 15
        %v479 = vpop.permute.xlu0 %478
        %480 = vrot.lane.b32.xlu0 %v467, 15
        %v481 = vpop.permute.xlu0 %480
        %482 = vrot.lane.b32.xlu0 %v468, 15
        %v483 = vpop.permute.xlu0 %482
        %484 = vrot.lane.b32.xlu0 %v469, 15
        %v485 = vpop.permute.xlu0 %484
        %486 = vrot.lane.b32.xlu0 %v470, 15
        %v487 = vpop.permute.xlu0 %486
        %488 = vrot.lane.b32.xlu0 %v471, 15
        %v489 = vpop.permute.xlu0 %488
        %vm490 = vcmask 121856
        %v491 = vsel %vm490, %v479, %v481
        %v492 = vsel %vm490, %v481, %v483
        %v493 = vsel %vm490, %v485, %v487
        %v494 = vsel %vm490, %v487, %v489
        %499 = vst [vmem:[#allocation3 + $0x40] sm:$0xff] %v491
        %500 = vst [vmem:[#allocation3 + $0x48] sm:$0xff] %v492
        %501 = vst [vmem:[#allocation3 + $0x50] sm:$0xff] %v493
        %502 = vst [vmem:[#allocation3 + $0x58] sm:$0xff] %v494
        %v503 = vld [vmem:[#allocation2] sm:$0xff]
        %v504 = vld [vmem:[#allocation2 + $0x8] sm:$0xff]
        %v505 = vld [vmem:[#allocation2 + $0x10] sm:$0xff]
        %v506 = vld [vmem:[#allocation2 + $0x20] sm:$0xff]
        %v507 = vld [vmem:[#allocation2 + $0x28] sm:$0xff]
        %v508 = vld [vmem:[#allocation2 + $0x30] sm:$0xff]
        %509 = vrot.lane.b32.xlu0 %v349, 127
        %v510 = vpop.permute.xlu0 %509
        %511 = vrot.lane.b32.xlu0 %v353, 127
        %v512 = vpop.permute.xlu0 %511
        %vm513 = vcmask 1039360
        %v514 = vsel %vm513, %v510, %v512
        %vm515 = vcmp.ne.s16.totalorder %v510, 0
        %vm516 = vcmp.ne.s16.totalorder %v514, 0
        %vm517 = vcmp.ne.s16.totalorder %v512, 0
        %v518 = vsel %vm515, 0, %v503
        %v519 = vsel %vm516, 0, %v504
        %v520 = vsel %vm517, 0, %v505
        %v521 = vsel %vm515, 0, %v506
        %v522 = vsel %vm516, 0, %v507
        %v523 = vsel %vm517, 0, %v508
        %530 = vrot.lane.b32.xlu0 %v518, 1
        %v531 = vpop.permute.xlu0 %530
        %532 = vrot.lane.b32.xlu0 %v519, 1
        %v533 = vpop.permute.xlu0 %532
        %534 = vrot.lane.b32.xlu0 %v520, 1
        %v535 = vpop.permute.xlu0 %534
        %536 = vrot.lane.b32.xlu0 %v521, 1
        %v537 = vpop.permute.xlu0 %536
        %538 = vrot.lane.b32.xlu0 %v522, 1
        %v539 = vpop.permute.xlu0 %538
        %540 = vrot.lane.b32.xlu0 %v523, 1
        %v541 = vpop.permute.xlu0 %540
        %vm542 = vcmask 7168
        %v543 = vsel %vm542, %v531, %v533
        %v544 = vsel %vm542, %v533, %v535
        %v545 = vsel %vm542, %v537, %v539
        %v546 = vsel %vm542, %v539, %v541
        %551 = vst [vmem:[#allocation3 + $0x60] sm:$0xff] %v543
        %552 = vst [vmem:[#allocation3 + $0x68] sm:$0xff] %v544
        %553 = vst [vmem:[#allocation3 + $0x70] sm:$0xff] %v545
        %554 = vst [vmem:[#allocation3 + $0x78] sm:$0xff] %v546
        %v555 = vld [vmem:[#allocation2 + $0x8] sm:$0xff]
        %v556 = vld [vmem:[#allocation2 + $0x10] sm:$0xff]
        %v557 = vld [vmem:[#allocation2 + $0x28] sm:$0xff]
        %v558 = vld [vmem:[#allocation2 + $0x30] sm:$0xff]
        %559 = vst [vmem:[#allocation3 + $0x80] sm:$0xff] %v555
        %560 = vst [vmem:[#allocation3 + $0x88] sm:$0xff] %v556
        %561 = vst [vmem:[#allocation3 + $0x90] sm:$0xff] %v557
        %562 = vst [vmem:[#allocation3 + $0x98] sm:$0xff] %v558
        %v563 = vld [vmem:[#allocation2 + $0x8] sm:$0xff]
        %v564 = vld [vmem:[#allocation2 + $0x10] sm:$0xff]
        %v565 = vld [vmem:[#allocation2 + $0x18] sm:$0xff]
        %v566 = vld [vmem:[#allocation2 + $0x28] sm:$0xff]
        %v567 = vld [vmem:[#allocation2 + $0x30] sm:$0xff]
        %v568 = vld [vmem:[#allocation2 + $0x38] sm:$0xff]
        %569 = vrot.lane.b32.xlu0 %v452, 1
        %v570 = vpop.permute.xlu0 %569
        %571 = vrot.lane.b32.xlu0 %v456, 1
        %v572 = vpop.permute.xlu0 %571
        %v573 = vsel %vm542, %v570, %v572
        %vm574 = vcmp.ne.s16.totalorder %v570, 0
        %vm575 = vcmp.ne.s16.totalorder %v573, 0
        %vm576 = vcmp.ne.s16.totalorder %v572, 0
        %v577 = vsel %vm574, 0, %v563
        %v578 = vsel %vm575, 0, %v564
        %v579 = vsel %vm576, 0, %v565
        %v580 = vsel %vm574, 0, %v566
        %v581 = vsel %vm575, 0, %v567
        %v582 = vsel %vm576, 0, %v568
        %589 = vrot.lane.b32.xlu0 %v577, 127
        %v590 = vpop.permute.xlu0 %589
        %591 = vrot.lane.b32.xlu0 %v578, 127
        %v592 = vpop.permute.xlu0 %591
        %593 = vrot.lane.b32.xlu0 %v579, 127
        %v594 = vpop.permute.xlu0 %593
        %595 = vrot.lane.b32.xlu0 %v580, 127
        %v596 = vpop.permute.xlu0 %595
        %597 = vrot.lane.b32.xlu0 %v581, 127
        %v598 = vpop.permute.xlu0 %597
        %599 = vrot.lane.b32.xlu0 %v582, 127
        %v600 = vpop.permute.xlu0 %599
        %v601 = vsel %vm513, %v590, %v592
        %v602 = vsel %vm513, %v592, %v594
        %v603 = vsel %vm513, %v596, %v598
        %v604 = vsel %vm513, %v598, %v600
        %609 = vst [vmem:[#allocation3 + $0xa0] sm:$0xff] %v601
        %610 = vst [vmem:[#allocation3 + $0xa8] sm:$0xff] %v602
        %611 = vst [vmem:[#allocation3 + $0xb0] sm:$0xff] %v603
        %612 = vst [vmem:[#allocation3 + $0xb8] sm:$0xff] %v604
        %v613 = vld [vmem:[#allocation2 + $0x8] sm:$0xff]
        %v614 = vld [vmem:[#allocation2 + $0x10] sm:$0xff]
        %v615 = vld [vmem:[#allocation2 + $0x18] sm:$0xff]
        %v616 = vld [vmem:[#allocation2 + $0x28] sm:$0xff]
        %v617 = vld [vmem:[#allocation2 + $0x30] sm:$0xff]
        %v618 = vld [vmem:[#allocation2 + $0x38] sm:$0xff]
        %619 = vrot.lane.b32.xlu0 %v349, 15
        %v620 = vpop.permute.xlu0 %619
        %621 = vrot.lane.b32.xlu0 %v353, 15
        %v622 = vpop.permute.xlu0 %621
        %v623 = vsel %vm490, %v620, %v622
        %vm624 = vcmp.ne.s16.totalorder %v620, 0
        %vm625 = vcmp.ne.s16.totalorder %v623, 0
        %vm626 = vcmp.ne.s16.totalorder %v622, 0
        %v627 = vsel %vm624, 0, %v613
        %v628 = vsel %vm625, 0, %v614
        %v629 = vsel %vm626, 0, %v615
        %v630 = vsel %vm624, 0, %v616
        %v631 = vsel %vm625, 0, %v617
        %v632 = vsel %vm626, 0, %v618
        %639 = vrot.lane.b32.xlu0 %v627, 113
        %v640 = vpop.permute.xlu0 %639
        %641 = vrot.lane.b32.xlu0 %v628, 113
        %v642 = vpop.permute.xlu0 %641
        %643 = vrot.lane.b32.xlu0 %v629, 113
        %v644 = vpop.permute.xlu0 %643
        %645 = vrot.lane.b32.xlu0 %v630, 113
        %v646 = vpop.permute.xlu0 %645
        %647 = vrot.lane.b32.xlu0 %v631, 113
        %v648 = vpop.permute.xlu0 %647
        %649 = vrot.lane.b32.xlu0 %v632, 113
        %v650 = vpop.permute.xlu0 %649
        %v651 = vsel %vm461, %v640, %v642
        %v652 = vsel %vm461, %v642, %v644
        %v653 = vsel %vm461, %v646, %v648
        %v654 = vsel %vm461, %v648, %v650
        %659 = vst [vmem:[#allocation3 + $0xc0] sm:$0xff] %v651
        %660 = vst [vmem:[#allocation3 + $0xc8] sm:$0xff] %v652
        %661 = vst [vmem:[#allocation3 + $0xd0] sm:$0xff] %v653
        %662 = vst [vmem:[#allocation3 + $0xd8] sm:$0xff] %v654
        %v663 = vld [vmem:[#allocation2 + $0x8] sm:$0xff]
        %v664 = vld [vmem:[#allocation2 + $0x10] sm:$0xff]
        %v665 = vld [vmem:[#allocation2 + $0x18] sm:$0xff]
        %v666 = vld [vmem:[#allocation2 + $0x28] sm:$0xff]
        %v667 = vld [vmem:[#allocation2 + $0x30] sm:$0xff]
        %v668 = vld [vmem:[#allocation2 + $0x38] sm:$0xff]
        %675 = vrot.lane.b32.xlu0 %v663, 112
        %v676 = vpop.permute.xlu0 %675
        %677 = vrot.lane.b32.xlu0 %v664, 112
        %v678 = vpop.permute.xlu0 %677
        %679 = vrot.lane.b32.xlu0 %v665, 112
        %v680 = vpop.permute.xlu0 %679
        %681 = vrot.lane.b32.xlu0 %v666, 112
        %v682 = vpop.permute.xlu0 %681
        %683 = vrot.lane.b32.xlu0 %v667, 112
        %v684 = vpop.permute.xlu0 %683
        %685 = vrot.lane.b32.xlu0 %v668, 112
        %v686 = vpop.permute.xlu0 %685
        %vm687 = vcmask 916480
        %v688 = vsel %vm687, %v676, %v678
        %v689 = vsel %vm687, %v678, %v680
        %v690 = vsel %vm687, %v682, %v684
        %v691 = vsel %vm687, %v684, %v686
        %696 = vst [vmem:[#allocation3 + $0xe0] sm:$0xff] %v688
        %697 = vst [vmem:[#allocation3 + $0xe8] sm:$0xff] %v689
        %698 = vst [vmem:[#allocation3 + $0xf0] sm:$0xff] %v690
        %699 = vst [vmem:[#allocation3 + $0xf8] sm:$0xff] %v691
        %v700 = vld [vmem:[#allocation2 + $0x8] sm:$0xff]
        %v701 = vld [vmem:[#allocation2 + $0x10] sm:$0xff]
        %v702 = vld [vmem:[#allocation2 + $0x18] sm:$0xff]
        %v703 = vld [vmem:[#allocation2 + $0x28] sm:$0xff]
        %v704 = vld [vmem:[#allocation2 + $0x30] sm:$0xff]
        %v705 = vld [vmem:[#allocation2 + $0x38] sm:$0xff]
        %706 = vrot.lane.b32.xlu0 %v452, 17
        %v707 = vpop.permute.xlu0 %706
        %708 = vrot.lane.b32.xlu0 %v456, 17
        %v709 = vpop.permute.xlu0 %708
        %v710 = vsel %vm387, %v707, %v709
        %vm711 = vcmp.ne.s16.totalorder %v707, 0
        %vm712 = vcmp.ne.s16.totalorder %v710, 0
        %vm713 = vcmp.ne.s16.totalorder %v709, 0
        %v714 = vsel %vm711, 0, %v700
        %v715 = vsel %vm712, 0, %v701
        %v716 = vsel %vm713, 0, %v702
        %v717 = vsel %vm711, 0, %v703
        %v718 = vsel %vm712, 0, %v704
        %v719 = vsel %vm713, 0, %v705
        %726 = vrot.lane.b32.xlu0 %v714, 111
        %v727 = vpop.permute.xlu0 %726
        %728 = vrot.lane.b32.xlu0 %v715, 111
        %v729 = vpop.permute.xlu0 %728
        %730 = vrot.lane.b32.xlu0 %v716, 111
        %v731 = vpop.permute.xlu0 %730
        %732 = vrot.lane.b32.xlu0 %v717, 111
        %v733 = vpop.permute.xlu0 %732
        %734 = vrot.lane.b32.xlu0 %v718, 111
        %v735 = vpop.permute.xlu0 %734
        %736 = vrot.lane.b32.xlu0 %v719, 111
        %v737 = vpop.permute.xlu0 %736
        %v738 = vsel %vm358, %v727, %v729
        %v739 = vsel %vm358, %v729, %v731
        %v740 = vsel %vm358, %v733, %v735
        %v741 = vsel %vm358, %v735, %v737
        %746 = vst [vmem:[#allocation3 + $0x100] sm:$0xff] %v738
        %747 = vst [vmem:[#allocation3 + $0x108] sm:$0xff] %v739
        %748 = vst [vmem:[#allocation3 + $0x110] sm:$0xff] %v740
        %749 = vst [vmem:[#allocation3 + $0x118] sm:$0xff] %v741
        %v750 = vld [vmem:[#allocation7] sm:$0xff]
        %v751 = vld [vmem:[#allocation7 + $0x8] sm:$0xf]
        %v752 = vld [vmem:[#allocation7 + $0xc] sm:$0xff]
        %v753 = vld [vmem:[#allocation7 + $0x14] sm:$0xf]
        %v754 = vld [vmem:[#allocation7 + $0x18] sm:$0xff]
        %v755 = vld [vmem:[#allocation7 + $0x20] sm:$0xf]
        %v756 = vld [vmem:[#allocation7 + $0x24] sm:$0xff]
        %v757 = vld [vmem:[#allocation7 + $0x2c] sm:$0xf]
        %v758 = vld [vmem:[#allocation3] sm:$0xff]
        %v759 = vld [vmem:[#allocation3 + $0x8] sm:$0xff]
        %v760 = vld [vmem:[#allocation3 + $0x10] sm:$0xff]
        %v761 = vld [vmem:[#allocation3 + $0x18] sm:$0xff]
        %v762 = vld [vmem:[#allocation3 + $0x20] sm:$0xff]
        %v763 = vld [vmem:[#allocation3 + $0x28] sm:$0xff]
        %v764 = vld [vmem:[#allocation3 + $0x30] sm:$0xff]
        %v765 = vld [vmem:[#allocation3 + $0x38] sm:$0xff]
        %v766 = vld [vmem:[#allocation3 + $0x40] sm:$0xff]
        %v767 = vld [vmem:[#allocation3 + $0x48] sm:$0xff]
        %v768 = vld [vmem:[#allocation3 + $0x50] sm:$0xff]
        %v769 = vld [vmem:[#allocation3 + $0x58] sm:$0xff]
        %v770 = vld [vmem:[#allocation3 + $0x60] sm:$0xff]
        %v771 = vld [vmem:[#allocation3 + $0x68] sm:$0xff]
        %v772 = vld [vmem:[#allocation3 + $0x70] sm:$0xff]
        %v773 = vld [vmem:[#allocation3 + $0x78] sm:$0xff]
        %v774 = vld [vmem:[#allocation3 + $0x80] sm:$0xff]
        %v775 = vld [vmem:[#allocation3 + $0x88] sm:$0xff]
        %v776 = vld [vmem:[#allocation3 + $0x90] sm:$0xff]
        %v777 = vld [vmem:[#allocation3 + $0x98] sm:$0xff]
        %v778 = vld [vmem:[#allocation3 + $0xa0] sm:$0xff]
        %v779 = vld [vmem:[#allocation3 + $0xa8] sm:$0xff]
        %v780 = vld [vmem:[#allocation3 + $0xb0] sm:$0xff]
        %v781 = vld [vmem:[#allocation3 + $0xb8] sm:$0xff]
        %v782 = vld [vmem:[#allocation3 + $0xc0] sm:$0xff]
        %v783 = vld [vmem:[#allocation3 + $0xc8] sm:$0xff]
        %v784 = vld [vmem:[#allocation3 + $0xd0] sm:$0xff]
        %v785 = vld [vmem:[#allocation3 + $0xd8] sm:$0xff]
        %v786 = vld [vmem:[#allocation3 + $0xe0] sm:$0xff]
        %v787 = vld [vmem:[#allocation3 + $0xe8] sm:$0xff]
        %v788 = vld [vmem:[#allocation3 + $0xf0] sm:$0xff]
        %v789 = vld [vmem:[#allocation3 + $0xf8] sm:$0xff]
        %v790 = vld [vmem:[#allocation3 + $0x100] sm:$0xff]
        %v791 = vld [vmem:[#allocation3 + $0x108] sm:$0xff]
        %v792 = vld [vmem:[#allocation3 + $0x110] sm:$0xff]
        %v793 = vld [vmem:[#allocation3 + $0x118] sm:$0xff]
        %v794 = vld [vmem:[#allocation9] sm:$0xff]
        %v795 = vld [vmem:[#allocation9 + $0x8] sm:$0xff]
        %v796 = vld [vmem:[#allocation9 + $0x10] sm:$0xff]
        %v797 = vld [vmem:[#allocation9 + $0x18] sm:$0xff]
        %799 = vset.pattern.permute.xlu0 0
        %800 = vperm.xlu0 %799, %v794
        %v801 = vpop.permute.xlu0 %800
        %804 = vset.pattern.permute.xlu0 0
        %805 = vperm.xlu0 %804, %v795
        %v806 = vpop.permute.xlu0 %805
        %809 = vset.pattern.permute.xlu0 0
        %810 = vperm.xlu0 %809, %v796
        %v811 = vpop.permute.xlu0 %810
        %814 = vset.pattern.permute.xlu0 0
        %815 = vperm.xlu0 %814, %v797
        %v816 = vpop.permute.xlu0 %815
        %v826 = vunpack.c.l.b16 %v750
        %v827 = vunpack.c.h.b16 %v750
        %v828 = vunpack.c.l.b16 %v751
        %v829 = vunpack.c.l.b16 %v752
        %v830 = vunpack.c.h.b16 %v752
        %v831 = vunpack.c.l.b16 %v753
        %v832 = vunpack.c.l.b16 %v754
        %v833 = vunpack.c.h.b16 %v754
        %v834 = vunpack.c.l.b16 %v755
        %v835 = vunpack.c.l.b16 %v756
        %v836 = vunpack.c.h.b16 %v756
        %v837 = vunpack.c.l.b16 %v757
        %v838 = vpack.c.b16 %v829, %v826
        %v839 = vpack.c.b16 %v830, %v827
        %v840 = vpack.c.b16 %v831, %v828
        %v841 = vpack.c.b16 %v835, %v832
        %v842 = vpack.c.b16 %v836, %v833
        %v843 = vpack.c.b16 %v837, %v834
        %vm848 = vcmask 261120
        %v850 = vsel %vm848, %v840, 0
        %v853 = vsel %vm848, %v843, 0
        %855 = vmatprep.subr.bf16.mxu0 %v759
        %856 = vmatpush1.bf16.msra.mxu0 %v758
        %857 = vmatprep.subr.bf16.mxu0 %v761
        %858 = vmatpush1.bf16.msra.mxu0 %v760
        %859 = vmatprep.subr.bf16.mxu0 %v763
        %860 = vmatpush1.bf16.msra.mxu0 %v762
        %861 = vmatprep.subr.bf16.mxu0 %v765
        %862 = vmatpush1.bf16.msra.mxu0 %v764
        %863 = vmatprep.subr.bf16.mxu0 %v767
        %864 = vmatpush1.bf16.msra.mxu0 %v766
        %865 = vmatprep.subr.bf16.mxu0 %v769
        %866 = vmatpush1.bf16.msra.mxu0 %v768
        %867 = vmatprep.subr.bf16.mxu0 %v771
        %868 = vmatpush1.bf16.msra.mxu0 %v770
        %869 = vmatprep.subr.bf16.mxu0 %v773
        %870 = vmatpush1.bf16.msra.mxu0 %v772
        %871 = vmatprep.subr.bf16.mxu0 %v775
        %872 = vmatpush1.bf16.msra.mxu0 %v774
        %873 = vmatprep.subr.bf16.mxu0 %v777
        %874 = vmatpush1.bf16.msra.mxu0 %v776
        %875 = vmatprep.subr.bf16.mxu0 %v779
        %876 = vmatpush1.bf16.msra.mxu0 %v778
        %877 = vmatprep.subr.bf16.mxu0 %v781
        %878 = vmatpush1.bf16.msra.mxu0 %v780
        %879 = vmatprep.subr.bf16.mxu0 %v783
        %880 = vmatpush1.bf16.msra.mxu0 %v782
        %881 = vmatprep.subr.bf16.mxu0 %v785
        %882 = vmatpush1.bf16.msra.mxu0 %v784
        %883 = vmatprep.subr.bf16.mxu0 %v787
        %884 = vmatpush1.bf16.msra.mxu0 %v786
        %885 = vmatprep.subr.bf16.mxu0 %v789
        %886 = vmatpush1.bf16.msra.mxu0 %v788
        %887 = vmatprep.mubr.bf16.mxu0 %v839
        %888 = vmatmul.mubr.bf16.gmra.mrb[0].mxu0 %v838
        %v889 = vpop.f32.mrb[0].mxu0
        %v890 = vadd.f32 %v801, %v889
        %v891 = vpop.f32.mrb[0].mxu0
        %v892 = vadd.f32 %v801, %v891
        %v893 = vpop.f32.mrb[0].mxu0
        %v894 = vadd.f32 %v806, %v893
        %v895 = vpop.f32.mrb[0].mxu0
        %v896 = vadd.f32 %v806, %v895
        %897 = vmatprep.mubr.bf16.mxu0 %v842
        %898 = vmatmul.mubr.bf16.gmra.mrb[0].mxu0 %v841
        %v899 = vpop.f32.mrb[0].mxu0
        %v900 = vadd.f32 %v811, %v899
        %v901 = vpop.f32.mrb[0].mxu0
        %v902 = vadd.f32 %v811, %v901
        %v903 = vpop.f32.mrb[0].mxu0
        %v904 = vadd.f32 %v816, %v903
        %v905 = vpop.f32.mrb[0].mxu0
        %v906 = vadd.f32 %v816, %v905
        %907 = vdwg.mxu0
        %908 = vmatprep.subr.bf16.mxu0 %v791
        %909 = vmatpush1.bf16.msra.mxu0 %v790
        %910 = vmatprep.subr.bf16.mxu0 %v793
        %911 = vmatpush1.bf16.msra.mxu0 %v792
        %912 = vmatprep.subr.bf16.mxu0 0
        %913 = vmatpush1.bf16.msra.mxu0 0
        %914 = vmatprep.subr.bf16.mxu0 0
        %915 = vmatpush1.bf16.msra.mxu0 0
        %916 = vmatprep.subr.bf16.mxu0 0
        %917 = vmatpush1.bf16.msra.mxu0 0
        %918 = vmatprep.subr.bf16.mxu0 0
        %919 = vmatpush1.bf16.msra.mxu0 0
        %920 = vmatprep.subr.bf16.mxu0 0
        %921 = vmatpush1.bf16.msra.mxu0 0
        %922 = vmatprep.subr.bf16.mxu0 0
        %923 = vmatpush1.bf16.msra.mxu0 0
        %924 = vmatprep.subr.bf16.mxu0 0
        %925 = vmatpush1.bf16.msra.mxu0 0
        %926 = vmatprep.subr.bf16.mxu0 0
        %927 = vmatpush1.bf16.msra.mxu0 0
        %928 = vmatprep.subr.bf16.mxu0 0
        %929 = vmatpush1.bf16.msra.mxu0 0
        %930 = vmatprep.subr.bf16.mxu0 0
        %931 = vmatpush1.bf16.msra.mxu0 0
        %932 = vmatprep.subr.bf16.mxu0 0
        %933 = vmatpush1.bf16.msra.mxu0 0
        %934 = vmatprep.subr.bf16.mxu0 0
        %935 = vmatpush1.bf16.msra.mxu0 0
        %936 = vmatprep.subr.bf16.mxu0 0
        %937 = vmatpush1.bf16.msra.mxu0 0
        %938 = vmatprep.subr.bf16.mxu0 0
        %939 = vmatpush1.bf16.msra.mxu0 0
        %940 = vmatprep.mubr.bf16.mxu0 0
        %941 = vmatmul.mubr.bf16.gmra.mrb[0].mxu0 %v850
        %v942 = vpop.f32.mrb[0].mxu0
        %v943 = vadd.f32 %v890, %v942
        %v944 = vpop.f32.mrb[0].mxu0
        %v945 = vadd.f32 %v892, %v944
        %v946 = vpop.f32.mrb[0].mxu0
        %v947 = vadd.f32 %v894, %v946
        %v948 = vpop.f32.mrb[0].mxu0
        %v949 = vadd.f32 %v896, %v948
        %950 = vmatprep.mubr.bf16.mxu0 0
        %951 = vmatmul.mubr.bf16.gmra.mrb[0].mxu0 %v853
        %v952 = vpop.f32.mrb[0].mxu0
        %v953 = vadd.f32 %v900, %v952
        %v954 = vpop.f32.mrb[0].mxu0
        %v955 = vadd.f32 %v902, %v954
        %v956 = vpop.f32.mrb[0].mxu0
        %v957 = vadd.f32 %v904, %v956
        %v958 = vpop.f32.mrb[0].mxu0
        %v959 = vadd.f32 %v906, %v958
        %960 = vdwg.mxu0
        %961 = vst [vmem:[%s261] sm:$0xff] %v943
        %962 = vst [vmem:[%s261 + $0x8] sm:$0xff] %v945
        %963 = vst [vmem:[%s261 + $0x10] sm:$0xff] %v947
        %964 = vst [vmem:[%s261 + $0x18] sm:$0xff] %v949
        %965 = vst [vmem:[%s261 + $0x20] sm:$0xff] %v953
        %966 = vst [vmem:[%s261 + $0x28] sm:$0xff] %v955
        %967 = vst [vmem:[%s261 + $0x30] sm:$0xff] %v957
        %968 = vst [vmem:[%s261 + $0x38] sm:$0xff] %v959
        %s969 = sand.u32 %s132, 1
        %s970 = scalar_lea.sflag [#allocation6], %s969
        %s971 = sand.u32 %s132, 1
        %s972 = smul.addr %s971, 64
        %s973 = scalar_lea.vmem [#allocation10], %s972
        // Predicated region
        $region45: #{sscbn_forward.5} parent=31 // pred_check
          %p974 = pneg %p142
        $region46: #{sscbn_forward.5} parent=31 // pred_check_branch
          %976 = sbr.rel (%p974) target = $region48
        $region47: #{sscbn_forward.5} parent=31 // pred_region
          %s977 = smul.u32 4, %s27
          %s978 = smul.u32 2, %s28
          %s980 = ssub.s32 1024, 1024
          %981 = vsyncadd %s970, %s980
          %s982 = smul.addr %s977, 2
          %s983 = sadd.s32 %s978, %s982
          %s984 = smul.addr %s26, 8
          %s985 = sadd.s32 %s983, %s984
          %s986 = smul.addr %s985, 128
          %s987 = scalar_lea.hbm %s3, %s986
          %s988 = sshll.u32 %s973, 4
          %s989 = int_to_ptr.vmem [resolvable:$true] %s988
          %994 = dma.vmem_to_hbm [thread:$0]  %s989, 1024, %s987, %s970, 256, 256, 16
        $region48: #{sscbn_forward.5} parent=31 // pred_fallthru
          _
      $region32: #{sscbn_forward.5} parent=5 // pred_fallthru
        _
      %p995 = scmp.le.s32.totalorder 2, %s16
      // Predicated region
      $region49: #{sscbn_forward.5} parent=5 // pred_check
        %p996 = pneg %p995
      $region50: #{sscbn_forward.5} parent=5 // pred_check_branch
        %998 = sbr.rel (%p996) target = $region52
      $region51: #{sscbn_forward.5} parent=5 // pred_region
        %s999 = ssub.s32 %s16, 2
        // Predicated region
        $region53: #{sscbn_forward.5} parent=51 // pred_check
          %p1000 = pneg %p148
        $region54: #{sscbn_forward.5} parent=51 // pred_check_branch
          %1002 = sbr.rel (%p1000) target = $region56
        $region55: #{sscbn_forward.5} parent=51 // pred_region
          %s1003 = sand.u32 %s133, 1
          %s1004 = scalar_lea.sflag [#allocation6], %s1003
          %s1005 = sand.u32 %s133, 1
          %s1006 = smul.addr %s1005, 64
          %s1007 = scalar_lea.vmem [#allocation10], %s1006
          %1008 = dma.done %s1004, 1024
        $region56: #{sscbn_forward.5} parent=51 // pred_fallthru
          _
      $region52: #{sscbn_forward.5} parent=5 // pred_fallthru
        _
    $region6: #{sscbn_forward.5} parent=1 // loop_footer
      %s20 = sadd.s32 1, %s16
    $region7: #{sscbn_forward.5} parent=1 // loop_footer_branch
      %15 = sbr.rel target = $region3
    $region8: #{sscbn_forward.5} parent=1 // loop_exit
      _
    %1009 = vsyncpa [#allocation5], 1
    %s1010 = scalar_lea.sflag [#allocation5], 1
    %1011 = vsyncpa %s1010, 1
    %1012 = vsyncpa [#allocation8], 1
    %1013 = vsyncpa [#allocation6], 1
    %s1014 = scalar_lea.sflag [#allocation6], 1
    %1015 = vsyncpa %s1014, 1

</llo_original>
